<compile_context>
chip_gen: v7x
topology: tpu7x:2x2x1
jax: 0.10.0
libtpu: 0.0.40
codegen_flags: <defaults>
</compile_context>

<pallas_src>
import jax
import jax.numpy as jnp
from jax.experimental import pallas as pl
from jax.experimental.pallas import tpu as pltpu

IN_FEATURES = 18
OUT_FEATURES = 1
GROUP = 128                     # batch rows folded onto the lane axis
KPACK = GROUP * IN_FEATURES     # 2304 lanes per reshaped row


def _round_up(a, m):
    return (a + m - 1) // m * m


def tbm_kernel(x_ref, w_hi_ref, w_lo_ref, b_ref, o_ref):
    # x_ref:    (ts, 2304) VMEM  -- each row holds 128 batch rows x 18 features
    # w_*_ref:  (2304, 128) VMEM -- block-diagonal kron(I_128, w), bf16 hi/lo
    # b_ref:    (1,) SMEM scalar bias
    # o_ref:    (ts, 128) VMEM   -- lane-dense sigmoid outputs
    x = x_ref[...].astype(jnp.float32)

    # bf16 hi/lo split (bf16x3): makes the MXU result match the f32 linear
    # layer to ~1e-5 regardless of the backend's default matmul precision.
    x_hi = x.astype(jnp.bfloat16)
    x_lo = (x - x_hi.astype(jnp.float32)).astype(jnp.bfloat16)
    w_hi = w_hi_ref[...]
    w_lo = w_lo_ref[...]

    y = jnp.dot(x_hi, w_hi, preferred_element_type=jnp.float32)
    y = y + jnp.dot(x_lo, w_hi, preferred_element_type=jnp.float32)
    y = y + jnp.dot(x_hi, w_lo, preferred_element_type=jnp.float32)
    y = y + b_ref[0]

    # Sigmoid: exp lands on the (otherwise idle) EUP; the exact divide runs on
    # the VALU but is fully hidden behind the HBM DMA of the next block.
    o_ref[...] = (1.0 / (1.0 + jnp.exp(-y))).astype(o_ref.dtype)


def tbm_predict(x, weight, bias, *, block_rows=32768):
    """x: (B, 18); weight: (1, 18); bias: (1,).  Returns (B, 1) (PyTorch contract)."""
    B, F = x.shape
    assert F == IN_FEATURES
    out_dtype = x.dtype

    # --- lane-dense view of x: (B, 18) -> (g, 2304).  Row-major reshape is free;
    #     only ragged batches need a contiguous zero-pad.  Tiny batches are
    #     padded to >= 8 groups so the MXU always sees M >= 8.
    b_pad = _round_up(B, GROUP)
    if b_pad // GROUP < 8:
        b_pad = _round_up(B, 8 * GROUP)
    if b_pad != B:
        x = jnp.pad(x, ((0, b_pad - B), (0, 0)))
    g = b_pad // GROUP
    x_r = x.reshape(g, KPACK)

    # --- block-diagonal weights kron(I_128, w): column j selects batch row j of
    #     each 128-row group.  Split into bf16 hi/lo parts.
    w_col = weight.reshape(IN_FEATURES, OUT_FEATURES).astype(jnp.float32)
    w_big = jnp.kron(jnp.eye(GROUP, dtype=jnp.float32), w_col)        # (2304, 128)
    w_hi = w_big.astype(jnp.bfloat16)
    w_lo = (w_big - w_hi.astype(jnp.float32)).astype(jnp.bfloat16)
    b_vec = bias.reshape(OUT_FEATURES).astype(jnp.float32)

    # --- batch tile: large enough to amortize the ~0.35us per-step overhead
    #     (default 32768 rows = 2.25 MiB real HBM data per step), but keep >= 2
    #     grid steps when possible so v7x megacore can split across both TCs.
    ts = min(max(block_rows // GROUP, 8), g)
    if g >= 16:
        ts = min(ts, _round_up(pl.cdiv(g, 2), 8))
    if ts < g:
        ts = max(8, (ts // 8) * 8)
    ts = min(ts, g)
    grid = (pl.cdiv(g, ts),)

    # Double-buffered x/out tiles + the two resident weight matrices (+ margin).
    vmem_needed = (2 * ts * KPACK * 4           # x blocks (f32)
                   + 2 * ts * GROUP * 4         # output blocks (f32)
                   + 2 * KPACK * GROUP * 2 * 2  # w_hi / w_lo (bf16, 2 buffers each)
                   )
    vmem_limit = min(max(vmem_needed + (8 << 20), 32 << 20), 64 << 20)

    out = pl.pallas_call(
        tbm_kernel,
        out_shape=jax.ShapeDtypeStruct((g, GROUP), jnp.float32),
        grid=grid,
        in_specs=[
            pl.BlockSpec((ts, KPACK), lambda i: (i, 0)),
            pl.BlockSpec((KPACK, GROUP), lambda i: (0, 0)),   # fetched once (constant block)
            pl.BlockSpec((KPACK, GROUP), lambda i: (0, 0)),   # fetched once (constant block)
            pl.BlockSpec(memory_space=pltpu.MemorySpace.SMEM),
        ],
        out_specs=pl.BlockSpec((ts, GROUP), lambda i: (i, 0)),
        compiler_params=pltpu.CompilerParams(
            dimension_semantics=("parallel",),
            vmem_limit_bytes=vmem_limit,
        ),
    )(x_r, w_hi, w_lo, b_vec)

    # (g, 128) lane-dense slab -> (B, 1).  The reshape is a free bitcast; the
    # slice only touches B*4 bytes.
    return out.reshape(b_pad, 1)[:B].astype(out_dtype)


def _init_params(key):
    # nn.Linear default init: U(-1/sqrt(fan_in), 1/sqrt(fan_in)).
    kw, kb = jax.random.split(key)
    bound = 1.0 / jnp.sqrt(jnp.float32(IN_FEATURES))
    weight = jax.random.uniform(
        kw, (OUT_FEATURES, IN_FEATURES), jnp.float32, minval=-bound, maxval=bound)
    bias = jax.random.uniform(
        kb, (OUT_FEATURES,), jnp.float32, minval=-bound, maxval=bound)
    return weight, bias


if __name__ == "__main__":
    key = jax.random.PRNGKey(0)
    k1, k2, k3, kp = jax.random.split(key, 4)
    weight, bias = _init_params(kp)

    def ref_fn(v):
        return jax.nn.sigmoid(v.astype(jnp.float32) @ weight.T + bias)

    # 1) Small primary check.
    x1 = jax.random.normal(k1, (8, IN_FEATURES), jnp.float32)
    o1 = jax.block_until_ready(tbm_predict(x1, weight, bias))
    assert o1.shape == (8, OUT_FEATURES)
    assert jnp.allclose(o1, ref_fn(x1), atol=1e-4, rtol=1e-4)

    # 2) Ragged batch (B % 128 != 0): exercises the zero-pad path.
    x2 = jax.random.normal(k2, (300, IN_FEATURES), jnp.float32)
    o2 = jax.block_until_ready(tbm_predict(x2, weight, bias))
    assert o2.shape == (300, OUT_FEATURES)
    assert jnp.allclose(o2, ref_fn(x2), atol=1e-4, rtol=1e-4)

    # 3) Multi-step grid with a partial last block (megacore-shardable batch axis).
    x3 = jax.random.normal(k3, (2500, IN_FEATURES), jnp.float32)
    o3 = jax.block_until_ready(tbm_predict(x3, weight, bias, block_rows=1024))
    assert o3.shape == (2500, OUT_FEATURES)
    assert jnp.allclose(o3, ref_fn(x3), atol=1e-4, rtol=1e-4)

    print("KERNEL_OK")
</pallas_src>

<mosaic_0001>
module attributes {stable_mosaic.version = 11 : i64} {
  func.func @tbm_kernel(%arg0: i32, %arg1: memref<8x2304xf32, #tpu.memory_space<vmem>>, %arg2: memref<2304x128xbf16, #tpu.memory_space<vmem>>, %arg3: memref<2304x128xbf16, #tpu.memory_space<vmem>>, %arg4: memref<1xf32, #tpu.memory_space<smem>>, %arg5: memref<8x128xf32, #tpu.memory_space<vmem>>) attributes {dimension_semantics = [#tpu.dimension_semantics<parallel>], iteration_bounds = array<i64: 1>, scalar_prefetch = 0 : i64, scratch_operands = 0 : i64, tpu.core_type = #tpu.core_type<tc>, window_params = [{transform_indices = @transform_0, window_bounds = array<i64: 8, 2304>}, {pipeline_mode = #tpu.pipeline_mode<synchronous>, transform_indices = @transform_1, window_bounds = array<i64: 2304, 128>}, {pipeline_mode = #tpu.pipeline_mode<synchronous>, transform_indices = @transform_2, window_bounds = array<i64: 2304, 128>}, {transform_indices = @transform_3, window_bounds = array<i64: 1>}, {transform_indices = @transform_4, window_bounds = array<i64: 8, 128>}]} {
    %c0 = arith.constant 0 : index
    %c0_0 = arith.constant 0 : index
    %0 = vector.load %arg1[%c0, %c0_0] : memref<8x2304xf32, #tpu.memory_space<vmem>>, vector<8x2304xf32>
    %1 = arith.truncf %0 : vector<8x2304xf32> to vector<8x2304xbf16>
    %2 = arith.extf %1 : vector<8x2304xbf16> to vector<8x2304xf32>
    %3 = arith.subf %0, %2 : vector<8x2304xf32>
    %4 = arith.truncf %3 : vector<8x2304xf32> to vector<8x2304xbf16>
    %c0_1 = arith.constant 0 : index
    %c0_2 = arith.constant 0 : index
    %5 = vector.load %arg2[%c0_1, %c0_2] : memref<2304x128xbf16, #tpu.memory_space<vmem>>, vector<2304x128xbf16>
    %c0_3 = arith.constant 0 : index
    %c0_4 = arith.constant 0 : index
    %6 = vector.load %arg3[%c0_3, %c0_4] : memref<2304x128xbf16, #tpu.memory_space<vmem>>, vector<2304x128xbf16>
    %cst = arith.constant dense<0.000000e+00> : vector<8x128xf32>
    %7 = tpu.matmul %1, %5, %cst {dimension_numbers = #tpu.dot_dimension_numbers<[1], [0], [0], [1], [0, 0, 1, 1], [], []>} : vector<8x2304xbf16>, vector<2304x128xbf16>, vector<8x128xf32> -> vector<8x128xf32>
    %cst_5 = arith.constant dense<0.000000e+00> : vector<8x128xf32>
    %8 = tpu.matmul %4, %5, %cst_5 {dimension_numbers = #tpu.dot_dimension_numbers<[1], [0], [0], [1], [0, 0, 1, 1], [], []>} : vector<8x2304xbf16>, vector<2304x128xbf16>, vector<8x128xf32> -> vector<8x128xf32>
    %9 = arith.addf %7, %8 : vector<8x128xf32>
    %cst_6 = arith.constant dense<0.000000e+00> : vector<8x128xf32>
    %10 = tpu.matmul %1, %6, %cst_6 {dimension_numbers = #tpu.dot_dimension_numbers<[1], [0], [0], [1], [0, 0, 1, 1], [], []>} : vector<8x2304xbf16>, vector<2304x128xbf16>, vector<8x128xf32> -> vector<8x128xf32>
    %11 = arith.addf %9, %10 : vector<8x128xf32>
    %c0_7 = arith.constant 0 : index
    %12 = memref.load %arg4[%c0_7] : memref<1xf32, #tpu.memory_space<smem>>
    %13 = vector.broadcast %12 : f32 to vector<8x128xf32>
    %14 = arith.addf %11, %13 : vector<8x128xf32>
    %cst_8 = arith.constant 0.000000e+00 : f32
    %15 = vector.broadcast %cst_8 : f32 to vector<8x128xf32>
    %16 = arith.subf %15, %14 : vector<8x128xf32>
    %17 = math.exp %16 : vector<8x128xf32>
    %cst_9 = arith.constant 1.000000e+00 : f32
    %18 = vector.broadcast %cst_9 : f32 to vector<8x128xf32>
    %19 = arith.addf %18, %17 : vector<8x128xf32>
    %cst_10 = arith.constant 1.000000e+00 : f32
    %20 = vector.broadcast %cst_10 : f32 to vector<8x128xf32>
    %21 = arith.divf %20, %19 : vector<8x128xf32>
    %c0_11 = arith.constant 0 : index
    %c0_12 = arith.constant 0 : index
    %22 = vector.load %arg5[%c0_11, %c0_12] : memref<8x128xf32, #tpu.memory_space<vmem>>, vector<8x128xf32>
    tpu.vector_store %arg5[%c0_11, %c0_12], %21 {strides = array<i32>} : memref<8x128xf32, #tpu.memory_space<vmem>>, vector<8x128xf32>,
    return
  }
  func.func @transform_0(%arg0: i32) -> (i32, i32) {
    %c0_i32 = arith.constant 0 : i32
    %c0_i32_0 = arith.constant 0 : i32
    return %arg0, %c0_i32 : i32, i32
  }
  func.func @transform_1(%arg0: i32) -> (i32, i32) {
    %c0_i32 = arith.constant 0 : i32
    %c0_i32_0 = arith.constant 0 : i32
    %c0_i32_1 = arith.constant 0 : i32
    return %c0_i32, %c0_i32_0 : i32, i32
  }
  func.func @transform_2(%arg0: i32) -> (i32, i32) {
    %c0_i32 = arith.constant 0 : i32
    %c0_i32_0 = arith.constant 0 : i32
    %c0_i32_1 = arith.constant 0 : i32
    return %c0_i32, %c0_i32_0 : i32, i32
  }
  func.func @transform_3(%arg0: i32) -> i32 {
    %c0_i32 = arith.constant 0 : i32
    %c0_i32_0 = arith.constant 0 : i32
    return %c0_i32 : i32
  }
  func.func @transform_4(%arg0: i32) -> (i32, i32) {
    %c0_i32 = arith.constant 0 : i32
    %c0_i32_0 = arith.constant 0 : i32
    return %arg0, %c0_i32 : i32, i32
  }
}

</mosaic_0001>

<llo_original>
// kernel: tpu_custom_call.1
$region0: #{tpu_custom_call.1}
  #allocation0 [shape = 'u32[]', space=smem, size = 0x4, offset = 0x4, fixed_abs, tag = 'smem constant byte address 0x4 - core index']
  #allocation1 [shape = 'u32[144,128]{1,0:T(1,128)}', space=vmem, size = 0x12000, scoped, tag = 'internal scratch']
  #allocation2 [shape = 'f32[1]{0:T(128)S(6)}', space=smem, size = 0x200, scoped, tag = 'scoped memory for tpu_custom_call.1']
  %s0 = inlined_call_operand.hbm [shape: f32[8,2304], index: 0, kind: input, shape index: {}]
  %s1 = inlined_call_operand.hbm [shape: bf16[2304,128], index: 1, kind: input, shape index: {}]
  %s2 = inlined_call_operand.hbm [shape: bf16[2304,128], index: 2, kind: input, shape index: {}]
  %s3 = inlined_call_operand.<no memory space> [shape: f32[1], index: 3, kind: input, shape index: {}]
  %s4 = inlined_call_operand.hbm [shape: f32[8,128], index: 4, kind: output, shape index: {}]
  %s5 = sld [smem:[#allocation0]]
  $region38: #{tpu_custom_call.1} parent=0
    _
  %s7 = ssub.s32 1, %s5
  %s8 = scalar_select 0, %s7, %s5
  %9 = sst [smem:[#allocation2]] %s3
  $region1: #{tpu_custom_call.1} parent=0
    #allocation3 [shape = 'u8[73728]{0}', space=vmem, size = 0x12000, scoped, tag = 'input window, operand 0, single buffered']
    #allocation4 [shape = 's32[1]{0}', space=sflag, size = 0x4, scoped, tag = 'scoped memory for tpu_custom_call.1']
    #allocation5 [shape = 's32[1]{0}', space=sflag, size = 0x4, scoped, tag = 'scoped memory for tpu_custom_call.1']
    #allocation6 [shape = 'u8[589824]{0}', space=vmem, size = 0x90000, scoped, tag = 'input window, operand 1, single buffered']
    #allocation7 [shape = 's32[1]{0}', space=sflag, size = 0x4, scoped, tag = 'scoped memory for tpu_custom_call.1']
    #allocation8 [shape = 'u8[589824]{0}', space=vmem, size = 0x90000, scoped, tag = 'input window, operand 2, single buffered']
    #allocation9 [shape = 'u8[4096]{0}', space=vmem, size = 0x1000, scoped, tag = 'output window, operand 0, single buffered']
    %10 = vsyncpa [#allocation4], 0
    %11 = vsyncpa [#allocation7], 0
    %12 = vsyncpa [#allocation5], 0
    // Predicated region
    $region2: #{tpu_custom_call.1} parent=1 // pred_check
      _
    $region3: #{tpu_custom_call.1} parent=1 // pred_check_branch
      %14 = sbr.rel (0) target = $region5
    $region4: #{tpu_custom_call.1} parent=1 // pred_region
      %s16 = ssub.s32 2304, 2304
      %17 = vsyncadd [#allocation4], %s16
      %s19 = sshll.u32 [#allocation3], 4
      %s20 = int_to_ptr.vmem [resolvable:$true] %s19
      %22 = dma.hbm_to_vmem [thread:$0]  %s0, 2304, %s20, [#allocation4]
    $region5: #{tpu_custom_call.1} parent=1 // pred_fallthru
      _
    // Predicated region
    $region6: #{tpu_custom_call.1} parent=1 // pred_check
      _
    $region7: #{tpu_custom_call.1} parent=1 // pred_check_branch
      %24 = sbr.rel (0) target = $region9
    $region8: #{tpu_custom_call.1} parent=1 // pred_region
      %s26 = ssub.s32 18432, 18432
      %27 = vsyncadd [#allocation7], %s26
      %s28 = sshll.u32 [#allocation6], 4
      %s29 = int_to_ptr.vmem [resolvable:$true] %s28
      %34 = dma.hbm_to_vmem [thread:$0]  %s1, 18432, %s29, [#allocation7], 64, 64, 4
    $region9: #{tpu_custom_call.1} parent=1 // pred_fallthru
      _
    // Predicated region
    $region10: #{tpu_custom_call.1} parent=1 // pred_check
      _
    $region11: #{tpu_custom_call.1} parent=1 // pred_check_branch
      %36 = sbr.rel (0) target = $region13
    $region12: #{tpu_custom_call.1} parent=1 // pred_region
      %s38 = ssub.s32 18432, 18432
      %39 = vsyncadd [#allocation7], %s38
      %s40 = sshll.u32 [#allocation8], 4
      %s41 = int_to_ptr.vmem [resolvable:$true] %s40
      %46 = dma.hbm_to_vmem [thread:$0]  %s2, 18432, %s41, [#allocation7], 64, 64, 4
    $region13: #{tpu_custom_call.1} parent=1 // pred_fallthru
      _
    // Predicated region
    $region14: #{tpu_custom_call.1} parent=1 // pred_check
      _
    $region15: #{tpu_custom_call.1} parent=1 // pred_check_branch
      %48 = sbr.rel (0) target = $region17
    $region16: #{tpu_custom_call.1} parent=1 // pred_region
      _
    $region17: #{tpu_custom_call.1} parent=1 // pred_fallthru
      _
    // Predicated region
    $region18: #{tpu_custom_call.1} parent=1 // pred_check
      _
    $region19: #{tpu_custom_call.1} parent=1 // pred_check_branch
      %50 = sbr.rel (0) target = $region21
    $region20: #{tpu_custom_call.1} parent=1 // pred_region
      %51 = dma.done [#allocation4], 2304
    $region21: #{tpu_custom_call.1} parent=1 // pred_fallthru
      _
    // Predicated region
    $region22: #{tpu_custom_call.1} parent=1 // pred_check
      _
    $region23: #{tpu_custom_call.1} parent=1 // pred_check_branch
      %53 = sbr.rel (0) target = $region25
    $region24: #{tpu_custom_call.1} parent=1 // pred_region
      %54 = dma.done [#allocation7], 18432
    $region25: #{tpu_custom_call.1} parent=1 // pred_fallthru
      _
    // Predicated region
    $region26: #{tpu_custom_call.1} parent=1 // pred_check
      _
    $region27: #{tpu_custom_call.1} parent=1 // pred_check_branch
      %56 = sbr.rel (0) target = $region29
    $region28: #{tpu_custom_call.1} parent=1 // pred_region
      %57 = dma.done [#allocation7], 18432
    $region29: #{tpu_custom_call.1} parent=1 // pred_fallthru
      _
    %v59 = vld [vmem:[#allocation3] sm:$0xff]
    %v60 = vld [vmem:[#allocation3 + $0x8] sm:$0xff]
    %v61 = vld [vmem:[#allocation3 + $0x10] sm:$0xff]
    %v62 = vld [vmem:[#allocation3 + $0x18] sm:$0xff]
    %v63 = vld [vmem:[#allocation3 + $0x20] sm:$0xff]
    %v64 = vld [vmem:[#allocation3 + $0x28] sm:$0xff]
    %v65 = vld [vmem:[#allocation3 + $0x30] sm:$0xff]
    %v66 = vld [vmem:[#allocation3 + $0x38] sm:$0xff]
    %v67 = vld [vmem:[#allocation3 + $0x40] sm:$0xff]
    %v68 = vld [vmem:[#allocation3 + $0x48] sm:$0xff]
    %v69 = vld [vmem:[#allocation3 + $0x50] sm:$0xff]
    %v70 = vld [vmem:[#allocation3 + $0x58] sm:$0xff]
    %v71 = vld [vmem:[#allocation3 + $0x60] sm:$0xff]
    %v72 = vld [vmem:[#allocation3 + $0x68] sm:$0xff]
    %v73 = vld [vmem:[#allocation3 + $0x70] sm:$0xff]
    %v74 = vld [vmem:[#allocation3 + $0x78] sm:$0xff]
    %v75 = vld [vmem:[#allocation3 + $0x80] sm:$0xff]
    %v76 = vld [vmem:[#allocation3 + $0x88] sm:$0xff]
    %v77 = vpack.c.bf16 %v59, %v59
    %v78 = vpack.c.bf16 %v60, %v60
    %v79 = vpack.c.bf16 %v61, %v61
    %v80 = vpack.c.bf16 %v62, %v62
    %v81 = vpack.c.bf16 %v63, %v63
    %v82 = vpack.c.bf16 %v64, %v64
    %v83 = vpack.c.bf16 %v65, %v65
    %v84 = vpack.c.bf16 %v66, %v66
    %v85 = vpack.c.bf16 %v67, %v67
    %v86 = vpack.c.bf16 %v68, %v68
    %v87 = vpack.c.bf16 %v69, %v69
    %v88 = vpack.c.bf16 %v70, %v70
    %v89 = vpack.c.bf16 %v71, %v71
    %v90 = vpack.c.bf16 %v72, %v72
    %v91 = vpack.c.bf16 %v73, %v73
    %v92 = vpack.c.bf16 %v74, %v74
    %v93 = vpack.c.bf16 %v75, %v75
    %v94 = vpack.c.bf16 %v76, %v76
    %v95 = vunpack.c.l.bf16 %v77
    %v96 = vunpack.c.l.bf16 %v78
    %v97 = vunpack.c.l.bf16 %v79
    %v98 = vunpack.c.l.bf16 %v80
    %v99 = vunpack.c.l.bf16 %v81
    %v100 = vunpack.c.l.bf16 %v82
    %v101 = vunpack.c.l.bf16 %v83
    %v102 = vunpack.c.l.bf16 %v84
    %v103 = vunpack.c.l.bf16 %v85
    %v104 = vunpack.c.l.bf16 %v86
    %v105 = vunpack.c.l.bf16 %v87
    %v106 = vunpack.c.l.bf16 %v88
    %v107 = vunpack.c.l.bf16 %v89
    %v108 = vunpack.c.l.bf16 %v90
    %v109 = vunpack.c.l.bf16 %v91
    %v110 = vunpack.c.l.bf16 %v92
    %v111 = vunpack.c.l.bf16 %v93
    %v112 = vunpack.c.l.bf16 %v94
    %v113 = vsub.f32 %v59, %v95
    %v114 = vsub.f32 %v60, %v96
    %v115 = vsub.f32 %v61, %v97
    %v116 = vsub.f32 %v62, %v98
    %v117 = vsub.f32 %v63, %v99
    %v118 = vsub.f32 %v64, %v100
    %v119 = vsub.f32 %v65, %v101
    %v120 = vsub.f32 %v66, %v102
    %v121 = vsub.f32 %v67, %v103
    %v122 = vsub.f32 %v68, %v104
    %v123 = vsub.f32 %v69, %v105
    %v124 = vsub.f32 %v70, %v106
    %v125 = vsub.f32 %v71, %v107
    %v126 = vsub.f32 %v72, %v108
    %v127 = vsub.f32 %v73, %v109
    %v128 = vsub.f32 %v74, %v110
    %v129 = vsub.f32 %v75, %v111
    %v130 = vsub.f32 %v76, %v112
    %v131 = vpack.c.bf16 %v113, %v113
    %v132 = vpack.c.bf16 %v114, %v114
    %v133 = vpack.c.bf16 %v115, %v115
    %v134 = vpack.c.bf16 %v116, %v116
    %v135 = vpack.c.bf16 %v117, %v117
    %v136 = vpack.c.bf16 %v118, %v118
    %v137 = vpack.c.bf16 %v119, %v119
    %v138 = vpack.c.bf16 %v120, %v120
    %v139 = vpack.c.bf16 %v121, %v121
    %v140 = vpack.c.bf16 %v122, %v122
    %v141 = vpack.c.bf16 %v123, %v123
    %v142 = vpack.c.bf16 %v124, %v124
    %v143 = vpack.c.bf16 %v125, %v125
    %v144 = vpack.c.bf16 %v126, %v126
    %v145 = vpack.c.bf16 %v127, %v127
    %v146 = vpack.c.bf16 %v128, %v128
    %v147 = vpack.c.bf16 %v129, %v129
    %v148 = vpack.c.bf16 %v130, %v130
    %v149 = vld [vmem:[#allocation6] sm:$0xf]
    %v150 = vld [vmem:[#allocation6 + $0x4] sm:$0xf]
    %v151 = vld [vmem:[#allocation6 + $0x8] sm:$0xf]
    %v152 = vld [vmem:[#allocation6 + $0xc] sm:$0xf]
    %v153 = vld [vmem:[#allocation6 + $0x10] sm:$0xf]
    %v154 = vld [vmem:[#allocation6 + $0x14] sm:$0xf]
    %v155 = vld [vmem:[#allocation6 + $0x18] sm:$0xf]
    %v156 = vld [vmem:[#allocation6 + $0x1c] sm:$0xf]
    %v157 = vld [vmem:[#allocation6 + $0x20] sm:$0xf]
    %v158 = vld [vmem:[#allocation6 + $0x24] sm:$0xf]
    %v159 = vld [vmem:[#allocation6 + $0x28] sm:$0xf]
    %v160 = vld [vmem:[#allocation6 + $0x2c] sm:$0xf]
    %v161 = vld [vmem:[#allocation6 + $0x30] sm:$0xf]
    %v162 = vld [vmem:[#allocation6 + $0x34] sm:$0xf]
    %v163 = vld [vmem:[#allocation6 + $0x38] sm:$0xf]
    %v164 = vld [vmem:[#allocation6 + $0x3c] sm:$0xf]
    %v165 = vld [vmem:[#allocation6 + $0x40] sm:$0xf]
    %v166 = vld [vmem:[#allocation6 + $0x44] sm:$0xf]
    %v167 = vld [vmem:[#allocation6 + $0x48] sm:$0xf]
    %v168 = vld [vmem:[#allocation6 + $0x4c] sm:$0xf]
    %v169 = vld [vmem:[#allocation6 + $0x50] sm:$0xf]
    %v170 = vld [vmem:[#allocation6 + $0x54] sm:$0xf]
    %v171 = vld [vmem:[#allocation6 + $0x58] sm:$0xf]
    %v172 = vld [vmem:[#allocation6 + $0x5c] sm:$0xf]
    %v173 = vld [vmem:[#allocation6 + $0x60] sm:$0xf]
    %v174 = vld [vmem:[#allocation6 + $0x64] sm:$0xf]
    %v175 = vld [vmem:[#allocation6 + $0x68] sm:$0xf]
    %v176 = vld [vmem:[#allocation6 + $0x6c] sm:$0xf]
    %v177 = vld [vmem:[#allocation6 + $0x70] sm:$0xf]
    %v178 = vld [vmem:[#allocation6 + $0x74] sm:$0xf]
    %v179 = vld [vmem:[#allocation6 + $0x78] sm:$0xf]
    %v180 = vld [vmem:[#allocation6 + $0x7c] sm:$0xf]
    %v181 = vld [vmem:[#allocation6 + $0x80] sm:$0xf]
    %v182 = vld [vmem:[#allocation6 + $0x84] sm:$0xf]
    %v183 = vld [vmem:[#allocation6 + $0x88] sm:$0xf]
    %v184 = vld [vmem:[#allocation6 + $0x8c] sm:$0xf]
    %v185 = vld [vmem:[#allocation6 + $0x90] sm:$0xf]
    %v186 = vld [vmem:[#allocation6 + $0x94] sm:$0xf]
    %v187 = vld [vmem:[#allocation6 + $0x98] sm:$0xf]
    %v188 = vld [vmem:[#allocation6 + $0x9c] sm:$0xf]
    %v189 = vld [vmem:[#allocation6 + $0xa0] sm:$0xf]
    %v190 = vld [vmem:[#allocation6 + $0xa4] sm:$0xf]
    %v191 = vld [vmem:[#allocation6 + $0xa8] sm:$0xf]
    %v192 = vld [vmem:[#allocation6 + $0xac] sm:$0xf]
    %v193 = vld [vmem:[#allocation6 + $0xb0] sm:$0xf]
    %v194 = vld [vmem:[#allocation6 + $0xb4] sm:$0xf]
    %v195 = vld [vmem:[#allocation6 + $0xb8] sm:$0xf]
    %v196 = vld [vmem:[#allocation6 + $0xbc] sm:$0xf]
    %v197 = vld [vmem:[#allocation6 + $0xc0] sm:$0xf]
    %v198 = vld [vmem:[#allocation6 + $0xc4] sm:$0xf]
    %v199 = vld [vmem:[#allocation6 + $0xc8] sm:$0xf]
    %v200 = vld [vmem:[#allocation6 + $0xcc] sm:$0xf]
    %v201 = vld [vmem:[#allocation6 + $0xd0] sm:$0xf]
    %v202 = vld [vmem:[#allocation6 + $0xd4] sm:$0xf]
    %v203 = vld [vmem:[#allocation6 + $0xd8] sm:$0xf]
    %v204 = vld [vmem:[#allocation6 + $0xdc] sm:$0xf]
    %v205 = vld [vmem:[#allocation6 + $0xe0] sm:$0xf]
    %v206 = vld [vmem:[#allocation6 + $0xe4] sm:$0xf]
    %v207 = vld [vmem:[#allocation6 + $0xe8] sm:$0xf]
    %v208 = vld [vmem:[#allocation6 + $0xec] sm:$0xf]
    %v209 = vld [vmem:[#allocation6 + $0xf0] sm:$0xf]
    %v210 = vld [vmem:[#allocation6 + $0xf4] sm:$0xf]
    %v211 = vld [vmem:[#allocation6 + $0xf8] sm:$0xf]
    %v212 = vld [vmem:[#allocation6 + $0xfc] sm:$0xf]
    %v213 = vld [vmem:[#allocation6 + $0x100] sm:$0xf]
    %v214 = vld [vmem:[#allocation6 + $0x104] sm:$0xf]
    %v215 = vld [vmem:[#allocation6 + $0x108] sm:$0xf]
    %v216 = vld [vmem:[#allocation6 + $0x10c] sm:$0xf]
    %v217 = vld [vmem:[#allocation6 + $0x110] sm:$0xf]
    %v218 = vld [vmem:[#allocation6 + $0x114] sm:$0xf]
    %v219 = vld [vmem:[#allocation6 + $0x118] sm:$0xf]
    %v220 = vld [vmem:[#allocation6 + $0x11c] sm:$0xf]
    %v221 = vld [vmem:[#allocation6 + $0x120] sm:$0xf]
    %v222 = vld [vmem:[#allocation6 + $0x124] sm:$0xf]
    %v223 = vld [vmem:[#allocation6 + $0x128] sm:$0xf]
    %v224 = vld [vmem:[#allocation6 + $0x12c] sm:$0xf]
    %v225 = vld [vmem:[#allocation6 + $0x130] sm:$0xf]
    %v226 = vld [vmem:[#allocation6 + $0x134] sm:$0xf]
    %v227 = vld [vmem:[#allocation6 + $0x138] sm:$0xf]
    %v228 = vld [vmem:[#allocation6 + $0x13c] sm:$0xf]
    %v229 = vld [vmem:[#allocation6 + $0x140] sm:$0xf]
    %v230 = vld [vmem:[#allocation6 + $0x144] sm:$0xf]
    %v231 = vld [vmem:[#allocation6 + $0x148] sm:$0xf]
    %v232 = vld [vmem:[#allocation6 + $0x14c] sm:$0xf]
    %v233 = vld [vmem:[#allocation6 + $0x150] sm:$0xf]
    %v234 = vld [vmem:[#allocation6 + $0x154] sm:$0xf]
    %v235 = vld [vmem:[#allocation6 + $0x158] sm:$0xf]
    %v236 = vld [vmem:[#allocation6 + $0x15c] sm:$0xf]
    %v237 = vld [vmem:[#allocation6 + $0x160] sm:$0xf]
    %v238 = vld [vmem:[#allocation6 + $0x164] sm:$0xf]
    %v239 = vld [vmem:[#allocation6 + $0x168] sm:$0xf]
    %v240 = vld [vmem:[#allocation6 + $0x16c] sm:$0xf]
    %v241 = vld [vmem:[#allocation6 + $0x170] sm:$0xf]
    %v242 = vld [vmem:[#allocation6 + $0x174] sm:$0xf]
    %v243 = vld [vmem:[#allocation6 + $0x178] sm:$0xf]
    %v244 = vld [vmem:[#allocation6 + $0x17c] sm:$0xf]
    %v245 = vld [vmem:[#allocation6 + $0x180] sm:$0xf]
    %v246 = vld [vmem:[#allocation6 + $0x184] sm:$0xf]
    %v247 = vld [vmem:[#allocation6 + $0x188] sm:$0xf]
    %v248 = vld [vmem:[#allocation6 + $0x18c] sm:$0xf]
    %v249 = vld [vmem:[#allocation6 + $0x190] sm:$0xf]
    %v250 = vld [vmem:[#allocation6 + $0x194] sm:$0xf]
    %v251 = vld [vmem:[#allocation6 + $0x198] sm:$0xf]
    %v252 = vld [vmem:[#allocation6 + $0x19c] sm:$0xf]
    %v253 = vld [vmem:[#allocation6 + $0x1a0] sm:$0xf]
    %v254 = vld [vmem:[#allocation6 + $0x1a4] sm:$0xf]
    %v255 = vld [vmem:[#allocation6 + $0x1a8] sm:$0xf]
    %v256 = vld [vmem:[#allocation6 + $0x1ac] sm:$0xf]
    %v257 = vld [vmem:[#allocation6 + $0x1b0] sm:$0xf]
    %v258 = vld [vmem:[#allocation6 + $0x1b4] sm:$0xf]
    %v259 = vld [vmem:[#allocation6 + $0x1b8] sm:$0xf]
    %v260 = vld [vmem:[#allocation6 + $0x1bc] sm:$0xf]
    %v261 = vld [vmem:[#allocation6 + $0x1c0] sm:$0xf]
    %v262 = vld [vmem:[#allocation6 + $0x1c4] sm:$0xf]
    %v263 = vld [vmem:[#allocation6 + $0x1c8] sm:$0xf]
    %v264 = vld [vmem:[#allocation6 + $0x1cc] sm:$0xf]
    %v265 = vld [vmem:[#allocation6 + $0x1d0] sm:$0xf]
    %v266 = vld [vmem:[#allocation6 + $0x1d4] sm:$0xf]
    %v267 = vld [vmem:[#allocation6 + $0x1d8] sm:$0xf]
    %v268 = vld [vmem:[#allocation6 + $0x1dc] sm:$0xf]
    %v269 = vld [vmem:[#allocation6 + $0x1e0] sm:$0xf]
    %v270 = vld [vmem:[#allocation6 + $0x1e4] sm:$0xf]
    %v271 = vld [vmem:[#allocation6 + $0x1e8] sm:$0xf]
    %v272 = vld [vmem:[#allocation6 + $0x1ec] sm:$0xf]
    %v273 = vld [vmem:[#allocation6 + $0x1f0] sm:$0xf]
    %v274 = vld [vmem:[#allocation6 + $0x1f4] sm:$0xf]
    %v275 = vld [vmem:[#allocation6 + $0x1f8] sm:$0xf]
    %v276 = vld [vmem:[#allocation6 + $0x1fc] sm:$0xf]
    %v277 = vld [vmem:[#allocation6 + $0x200] sm:$0xf]
    %v278 = vld [vmem:[#allocation6 + $0x204] sm:$0xf]
    %v279 = vld [vmem:[#allocation6 + $0x208] sm:$0xf]
    %v280 = vld [vmem:[#allocation6 + $0x20c] sm:$0xf]
    %v281 = vld [vmem:[#allocation6 + $0x210] sm:$0xf]
    %v282 = vld [vmem:[#allocation6 + $0x214] sm:$0xf]
    %v283 = vld [vmem:[#allocation6 + $0x218] sm:$0xf]
    %v284 = vld [vmem:[#allocation6 + $0x21c] sm:$0xf]
    %v285 = vld [vmem:[#allocation6 + $0x220] sm:$0xf]
    %v286 = vld [vmem:[#allocation6 + $0x224] sm:$0xf]
    %v287 = vld [vmem:[#allocation6 + $0x228] sm:$0xf]
    %v288 = vld [vmem:[#allocation6 + $0x22c] sm:$0xf]
    %v289 = vld [vmem:[#allocation6 + $0x230] sm:$0xf]
    %v290 = vld [vmem:[#allocation6 + $0x234] sm:$0xf]
    %v291 = vld [vmem:[#allocation6 + $0x238] sm:$0xf]
    %v292 = vld [vmem:[#allocation6 + $0x23c] sm:$0xf]
    %v293 = vld [vmem:[#allocation6 + $0x240] sm:$0xf]
    %v294 = vld [vmem:[#allocation6 + $0x244] sm:$0xf]
    %v295 = vld [vmem:[#allocation6 + $0x248] sm:$0xf]
    %v296 = vld [vmem:[#allocation6 + $0x24c] sm:$0xf]
    %v297 = vld [vmem:[#allocation6 + $0x250] sm:$0xf]
    %v298 = vld [vmem:[#allocation6 + $0x254] sm:$0xf]
    %v299 = vld [vmem:[#allocation6 + $0x258] sm:$0xf]
    %v300 = vld [vmem:[#allocation6 + $0x25c] sm:$0xf]
    %v301 = vld [vmem:[#allocation6 + $0x260] sm:$0xf]
    %v302 = vld [vmem:[#allocation6 + $0x264] sm:$0xf]
    %v303 = vld [vmem:[#allocation6 + $0x268] sm:$0xf]
    %v304 = vld [vmem:[#allocation6 + $0x26c] sm:$0xf]
    %v305 = vld [vmem:[#allocation6 + $0x270] sm:$0xf]
    %v306 = vld [vmem:[#allocation6 + $0x274] sm:$0xf]
    %v307 = vld [vmem:[#allocation6 + $0x278] sm:$0xf]
    %v308 = vld [vmem:[#allocation6 + $0x27c] sm:$0xf]
    %v309 = vld [vmem:[#allocation6 + $0x280] sm:$0xf]
    %v310 = vld [vmem:[#allocation6 + $0x284] sm:$0xf]
    %v311 = vld [vmem:[#allocation6 + $0x288] sm:$0xf]
    %v312 = vld [vmem:[#allocation6 + $0x28c] sm:$0xf]
    %v313 = vld [vmem:[#allocation6 + $0x290] sm:$0xf]
    %v314 = vld [vmem:[#allocation6 + $0x294] sm:$0xf]
    %v315 = vld [vmem:[#allocation6 + $0x298] sm:$0xf]
    %v316 = vld [vmem:[#allocation6 + $0x29c] sm:$0xf]
    %v317 = vld [vmem:[#allocation6 + $0x2a0] sm:$0xf]
    %v318 = vld [vmem:[#allocation6 + $0x2a4] sm:$0xf]
    %v319 = vld [vmem:[#allocation6 + $0x2a8] sm:$0xf]
    %v320 = vld [vmem:[#allocation6 + $0x2ac] sm:$0xf]
    %v321 = vld [vmem:[#allocation6 + $0x2b0] sm:$0xf]
    %v322 = vld [vmem:[#allocation6 + $0x2b4] sm:$0xf]
    %v323 = vld [vmem:[#allocation6 + $0x2b8] sm:$0xf]
    %v324 = vld [vmem:[#allocation6 + $0x2bc] sm:$0xf]
    %v325 = vld [vmem:[#allocation6 + $0x2c0] sm:$0xf]
    %v326 = vld [vmem:[#allocation6 + $0x2c4] sm:$0xf]
    %v327 = vld [vmem:[#allocation6 + $0x2c8] sm:$0xf]
    %v328 = vld [vmem:[#allocation6 + $0x2cc] sm:$0xf]
    %v329 = vld [vmem:[#allocation6 + $0x2d0] sm:$0xf]
    %v330 = vld [vmem:[#allocation6 + $0x2d4] sm:$0xf]
    %v331 = vld [vmem:[#allocation6 + $0x2d8] sm:$0xf]
    %v332 = vld [vmem:[#allocation6 + $0x2dc] sm:$0xf]
    %v333 = vld [vmem:[#allocation6 + $0x2e0] sm:$0xf]
    %v334 = vld [vmem:[#allocation6 + $0x2e4] sm:$0xf]
    %v335 = vld [vmem:[#allocation6 + $0x2e8] sm:$0xf]
    %v336 = vld [vmem:[#allocation6 + $0x2ec] sm:$0xf]
    %v337 = vld [vmem:[#allocation6 + $0x2f0] sm:$0xf]
    %v338 = vld [vmem:[#allocation6 + $0x2f4] sm:$0xf]
    %v339 = vld [vmem:[#allocation6 + $0x2f8] sm:$0xf]
    %v340 = vld [vmem:[#allocation6 + $0x2fc] sm:$0xf]
    %v341 = vld [vmem:[#allocation6 + $0x300] sm:$0xf]
    %v342 = vld [vmem:[#allocation6 + $0x304] sm:$0xf]
    %v343 = vld [vmem:[#allocation6 + $0x308] sm:$0xf]
    %v344 = vld [vmem:[#allocation6 + $0x30c] sm:$0xf]
    %v345 = vld [vmem:[#allocation6 + $0x310] sm:$0xf]
    %v346 = vld [vmem:[#allocation6 + $0x314] sm:$0xf]
    %v347 = vld [vmem:[#allocation6 + $0x318] sm:$0xf]
    %v348 = vld [vmem:[#allocation6 + $0x31c] sm:$0xf]
    %v349 = vld [vmem:[#allocation6 + $0x320] sm:$0xf]
    %v350 = vld [vmem:[#allocation6 + $0x324] sm:$0xf]
    %v351 = vld [vmem:[#allocation6 + $0x328] sm:$0xf]
    %v352 = vld [vmem:[#allocation6 + $0x32c] sm:$0xf]
    %v353 = vld [vmem:[#allocation6 + $0x330] sm:$0xf]
    %v354 = vld [vmem:[#allocation6 + $0x334] sm:$0xf]
    %v355 = vld [vmem:[#allocation6 + $0x338] sm:$0xf]
    %v356 = vld [vmem:[#allocation6 + $0x33c] sm:$0xf]
    %v357 = vld [vmem:[#allocation6 + $0x340] sm:$0xf]
    %v358 = vld [vmem:[#allocation6 + $0x344] sm:$0xf]
    %v359 = vld [vmem:[#allocation6 + $0x348] sm:$0xf]
    %v360 = vld [vmem:[#allocation6 + $0x34c] sm:$0xf]
    %v361 = vld [vmem:[#allocation6 + $0x350] sm:$0xf]
    %v362 = vld [vmem:[#allocation6 + $0x354] sm:$0xf]
    %v363 = vld [vmem:[#allocation6 + $0x358] sm:$0xf]
    %v364 = vld [vmem:[#allocation6 + $0x35c] sm:$0xf]
    %v365 = vld [vmem:[#allocation6 + $0x360] sm:$0xf]
    %v366 = vld [vmem:[#allocation6 + $0x364] sm:$0xf]
    %v367 = vld [vmem:[#allocation6 + $0x368] sm:$0xf]
    %v368 = vld [vmem:[#allocation6 + $0x36c] sm:$0xf]
    %v369 = vld [vmem:[#allocation6 + $0x370] sm:$0xf]
    %v370 = vld [vmem:[#allocation6 + $0x374] sm:$0xf]
    %v371 = vld [vmem:[#allocation6 + $0x378] sm:$0xf]
    %v372 = vld [vmem:[#allocation6 + $0x37c] sm:$0xf]
    %v373 = vld [vmem:[#allocation6 + $0x380] sm:$0xf]
    %v374 = vld [vmem:[#allocation6 + $0x384] sm:$0xf]
    %v375 = vld [vmem:[#allocation6 + $0x388] sm:$0xf]
    %v376 = vld [vmem:[#allocation6 + $0x38c] sm:$0xf]
    %v377 = vld [vmem:[#allocation6 + $0x390] sm:$0xf]
    %v378 = vld [vmem:[#allocation6 + $0x394] sm:$0xf]
    %v379 = vld [vmem:[#allocation6 + $0x398] sm:$0xf]
    %v380 = vld [vmem:[#allocation6 + $0x39c] sm:$0xf]
    %v381 = vld [vmem:[#allocation6 + $0x3a0] sm:$0xf]
    %v382 = vld [vmem:[#allocation6 + $0x3a4] sm:$0xf]
    %v383 = vld [vmem:[#allocation6 + $0x3a8] sm:$0xf]
    %v384 = vld [vmem:[#allocation6 + $0x3ac] sm:$0xf]
    %v385 = vld [vmem:[#allocation6 + $0x3b0] sm:$0xf]
    %v386 = vld [vmem:[#allocation6 + $0x3b4] sm:$0xf]
    %v387 = vld [vmem:[#allocation6 + $0x3b8] sm:$0xf]
    %v388 = vld [vmem:[#allocation6 + $0x3bc] sm:$0xf]
    %v389 = vld [vmem:[#allocation6 + $0x3c0] sm:$0xf]
    %v390 = vld [vmem:[#allocation6 + $0x3c4] sm:$0xf]
    %v391 = vld [vmem:[#allocation6 + $0x3c8] sm:$0xf]
    %v392 = vld [vmem:[#allocation6 + $0x3cc] sm:$0xf]
    %v393 = vld [vmem:[#allocation6 + $0x3d0] sm:$0xf]
    %v394 = vld [vmem:[#allocation6 + $0x3d4] sm:$0xf]
    %v395 = vld [vmem:[#allocation6 + $0x3d8] sm:$0xf]
    %v396 = vld [vmem:[#allocation6 + $0x3dc] sm:$0xf]
    %v397 = vld [vmem:[#allocation6 + $0x3e0] sm:$0xf]
    %v398 = vld [vmem:[#allocation6 + $0x3e4] sm:$0xf]
    %v399 = vld [vmem:[#allocation6 + $0x3e8] sm:$0xf]
    %v400 = vld [vmem:[#allocation6 + $0x3ec] sm:$0xf]
    %v401 = vld [vmem:[#allocation6 + $0x3f0] sm:$0xf]
    %v402 = vld [vmem:[#allocation6 + $0x3f4] sm:$0xf]
    %v403 = vld [vmem:[#allocation6 + $0x3f8] sm:$0xf]
    %v404 = vld [vmem:[#allocation6 + $0x3fc] sm:$0xf]
    %v405 = vld [vmem:[#allocation6 + $0x400] sm:$0xf]
    %v406 = vld [vmem:[#allocation6 + $0x404] sm:$0xf]
    %v407 = vld [vmem:[#allocation6 + $0x408] sm:$0xf]
    %v408 = vld [vmem:[#allocation6 + $0x40c] sm:$0xf]
    %v409 = vld [vmem:[#allocation6 + $0x410] sm:$0xf]
    %v410 = vld [vmem:[#allocation6 + $0x414] sm:$0xf]
    %v411 = vld [vmem:[#allocation6 + $0x418] sm:$0xf]
    %v412 = vld [vmem:[#allocation6 + $0x41c] sm:$0xf]
    %v413 = vld [vmem:[#allocation6 + $0x420] sm:$0xf]
    %v414 = vld [vmem:[#allocation6 + $0x424] sm:$0xf]
    %v415 = vld [vmem:[#allocation6 + $0x428] sm:$0xf]
    %v416 = vld [vmem:[#allocation6 + $0x42c] sm:$0xf]
    %v417 = vld [vmem:[#allocation6 + $0x430] sm:$0xf]
    %v418 = vld [vmem:[#allocation6 + $0x434] sm:$0xf]
    %v419 = vld [vmem:[#allocation6 + $0x438] sm:$0xf]
    %v420 = vld [vmem:[#allocation6 + $0x43c] sm:$0xf]
    %v421 = vld [vmem:[#allocation6 + $0x440] sm:$0xf]
    %v422 = vld [vmem:[#allocation6 + $0x444] sm:$0xf]
    %v423 = vld [vmem:[#allocation6 + $0x448] sm:$0xf]
    %v424 = vld [vmem:[#allocation6 + $0x44c] sm:$0xf]
    %v425 = vld [vmem:[#allocation6 + $0x450] sm:$0xf]
    %v426 = vld [vmem:[#allocation6 + $0x454] sm:$0xf]
    %v427 = vld [vmem:[#allocation6 + $0x458] sm:$0xf]
    %v428 = vld [vmem:[#allocation6 + $0x45c] sm:$0xf]
    %v429 = vld [vmem:[#allocation6 + $0x460] sm:$0xf]
    %v430 = vld [vmem:[#allocation6 + $0x464] sm:$0xf]
    %v431 = vld [vmem:[#allocation6 + $0x468] sm:$0xf]
    %v432 = vld [vmem:[#allocation6 + $0x46c] sm:$0xf]
    %v433 = vld [vmem:[#allocation6 + $0x470] sm:$0xf]
    %v434 = vld [vmem:[#allocation6 + $0x474] sm:$0xf]
    %v435 = vld [vmem:[#allocation6 + $0x478] sm:$0xf]
    %v436 = vld [vmem:[#allocation6 + $0x47c] sm:$0xf]
    %v437 = vld [vmem:[#allocation8] sm:$0xf]
    %v438 = vld [vmem:[#allocation8 + $0x4] sm:$0xf]
    %v439 = vld [vmem:[#allocation8 + $0x8] sm:$0xf]
    %v440 = vld [vmem:[#allocation8 + $0xc] sm:$0xf]
    %v441 = vld [vmem:[#allocation8 + $0x10] sm:$0xf]
    %v442 = vld [vmem:[#allocation8 + $0x14] sm:$0xf]
    %v443 = vld [vmem:[#allocation8 + $0x18] sm:$0xf]
    %v444 = vld [vmem:[#allocation8 + $0x1c] sm:$0xf]
    %v445 = vld [vmem:[#allocation8 + $0x20] sm:$0xf]
    %v446 = vld [vmem:[#allocation8 + $0x24] sm:$0xf]
    %v447 = vld [vmem:[#allocation8 + $0x28] sm:$0xf]
    %v448 = vld [vmem:[#allocation8 + $0x2c] sm:$0xf]
    %v449 = vld [vmem:[#allocation8 + $0x30] sm:$0xf]
    %v450 = vld [vmem:[#allocation8 + $0x34] sm:$0xf]
    %v451 = vld [vmem:[#allocation8 + $0x38] sm:$0xf]
    %v452 = vld [vmem:[#allocation8 + $0x3c] sm:$0xf]
    %v453 = vld [vmem:[#allocation8 + $0x40] sm:$0xf]
    %v454 = vld [vmem:[#allocation8 + $0x44] sm:$0xf]
    %v455 = vld [vmem:[#allocation8 + $0x48] sm:$0xf]
    %v456 = vld [vmem:[#allocation8 + $0x4c] sm:$0xf]
    %v457 = vld [vmem:[#allocation8 + $0x50] sm:$0xf]
    %v458 = vld [vmem:[#allocation8 + $0x54] sm:$0xf]
    %v459 = vld [vmem:[#allocation8 + $0x58] sm:$0xf]
    %v460 = vld [vmem:[#allocation8 + $0x5c] sm:$0xf]
    %v461 = vld [vmem:[#allocation8 + $0x60] sm:$0xf]
    %v462 = vld [vmem:[#allocation8 + $0x64] sm:$0xf]
    %v463 = vld [vmem:[#allocation8 + $0x68] sm:$0xf]
    %v464 = vld [vmem:[#allocation8 + $0x6c] sm:$0xf]
    %v465 = vld [vmem:[#allocation8 + $0x70] sm:$0xf]
    %v466 = vld [vmem:[#allocation8 + $0x74] sm:$0xf]
    %v467 = vld [vmem:[#allocation8 + $0x78] sm:$0xf]
    %v468 = vld [vmem:[#allocation8 + $0x7c] sm:$0xf]
    %v469 = vld [vmem:[#allocation8 + $0x80] sm:$0xf]
    %v470 = vld [vmem:[#allocation8 + $0x84] sm:$0xf]
    %v471 = vld [vmem:[#allocation8 + $0x88] sm:$0xf]
    %v472 = vld [vmem:[#allocation8 + $0x8c] sm:$0xf]
    %v473 = vld [vmem:[#allocation8 + $0x90] sm:$0xf]
    %v474 = vld [vmem:[#allocation8 + $0x94] sm:$0xf]
    %v475 = vld [vmem:[#allocation8 + $0x98] sm:$0xf]
    %v476 = vld [vmem:[#allocation8 + $0x9c] sm:$0xf]
    %v477 = vld [vmem:[#allocation8 + $0xa0] sm:$0xf]
    %v478 = vld [vmem:[#allocation8 + $0xa4] sm:$0xf]
    %v479 = vld [vmem:[#allocation8 + $0xa8] sm:$0xf]
    %v480 = vld [vmem:[#allocation8 + $0xac] sm:$0xf]
    %v481 = vld [vmem:[#allocation8 + $0xb0] sm:$0xf]
    %v482 = vld [vmem:[#allocation8 + $0xb4] sm:$0xf]
    %v483 = vld [vmem:[#allocation8 + $0xb8] sm:$0xf]
    %v484 = vld [vmem:[#allocation8 + $0xbc] sm:$0xf]
    %v485 = vld [vmem:[#allocation8 + $0xc0] sm:$0xf]
    %v486 = vld [vmem:[#allocation8 + $0xc4] sm:$0xf]
    %v487 = vld [vmem:[#allocation8 + $0xc8] sm:$0xf]
    %v488 = vld [vmem:[#allocation8 + $0xcc] sm:$0xf]
    %v489 = vld [vmem:[#allocation8 + $0xd0] sm:$0xf]
    %v490 = vld [vmem:[#allocation8 + $0xd4] sm:$0xf]
    %v491 = vld [vmem:[#allocation8 + $0xd8] sm:$0xf]
    %v492 = vld [vmem:[#allocation8 + $0xdc] sm:$0xf]
    %v493 = vld [vmem:[#allocation8 + $0xe0] sm:$0xf]
    %v494 = vld [vmem:[#allocation8 + $0xe4] sm:$0xf]
    %v495 = vld [vmem:[#allocation8 + $0xe8] sm:$0xf]
    %v496 = vld [vmem:[#allocation8 + $0xec] sm:$0xf]
    %v497 = vld [vmem:[#allocation8 + $0xf0] sm:$0xf]
    %v498 = vld [vmem:[#allocation8 + $0xf4] sm:$0xf]
    %v499 = vld [vmem:[#allocation8 + $0xf8] sm:$0xf]
    %v500 = vld [vmem:[#allocation8 + $0xfc] sm:$0xf]
    %v501 = vld [vmem:[#allocation8 + $0x100] sm:$0xf]
    %v502 = vld [vmem:[#allocation8 + $0x104] sm:$0xf]
    %v503 = vld [vmem:[#allocation8 + $0x108] sm:$0xf]
    %v504 = vld [vmem:[#allocation8 + $0x10c] sm:$0xf]
    %v505 = vld [vmem:[#allocation8 + $0x110] sm:$0xf]
    %v506 = vld [vmem:[#allocation8 + $0x114] sm:$0xf]
    %v507 = vld [vmem:[#allocation8 + $0x118] sm:$0xf]
    %v508 = vld [vmem:[#allocation8 + $0x11c] sm:$0xf]
    %v509 = vld [vmem:[#allocation8 + $0x120] sm:$0xf]
    %v510 = vld [vmem:[#allocation8 + $0x124] sm:$0xf]
    %v511 = vld [vmem:[#allocation8 + $0x128] sm:$0xf]
    %v512 = vld [vmem:[#allocation8 + $0x12c] sm:$0xf]
    %v513 = vld [vmem:[#allocation8 + $0x130] sm:$0xf]
    %v514 = vld [vmem:[#allocation8 + $0x134] sm:$0xf]
    %v515 = vld [vmem:[#allocation8 + $0x138] sm:$0xf]
    %v516 = vld [vmem:[#allocation8 + $0x13c] sm:$0xf]
    %v517 = vld [vmem:[#allocation8 + $0x140] sm:$0xf]
    %v518 = vld [vmem:[#allocation8 + $0x144] sm:$0xf]
    %v519 = vld [vmem:[#allocation8 + $0x148] sm:$0xf]
    %v520 = vld [vmem:[#allocation8 + $0x14c] sm:$0xf]
    %v521 = vld [vmem:[#allocation8 + $0x150] sm:$0xf]
    %v522 = vld [vmem:[#allocation8 + $0x154] sm:$0xf]
    %v523 = vld [vmem:[#allocation8 + $0x158] sm:$0xf]
    %v524 = vld [vmem:[#allocation8 + $0x15c] sm:$0xf]
    %v525 = vld [vmem:[#allocation8 + $0x160] sm:$0xf]
    %v526 = vld [vmem:[#allocation8 + $0x164] sm:$0xf]
    %v527 = vld [vmem:[#allocation8 + $0x168] sm:$0xf]
    %v528 = vld [vmem:[#allocation8 + $0x16c] sm:$0xf]
    %v529 = vld [vmem:[#allocation8 + $0x170] sm:$0xf]
    %v530 = vld [vmem:[#allocation8 + $0x174] sm:$0xf]
    %v531 = vld [vmem:[#allocation8 + $0x178] sm:$0xf]
    %v532 = vld [vmem:[#allocation8 + $0x17c] sm:$0xf]
    %v533 = vld [vmem:[#allocation8 + $0x180] sm:$0xf]
    %v534 = vld [vmem:[#allocation8 + $0x184] sm:$0xf]
    %v535 = vld [vmem:[#allocation8 + $0x188] sm:$0xf]
    %v536 = vld [vmem:[#allocation8 + $0x18c] sm:$0xf]
    %v537 = vld [vmem:[#allocation8 + $0x190] sm:$0xf]
    %v538 = vld [vmem:[#allocation8 + $0x194] sm:$0xf]
    %v539 = vld [vmem:[#allocation8 + $0x198] sm:$0xf]
    %v540 = vld [vmem:[#allocation8 + $0x19c] sm:$0xf]
    %v541 = vld [vmem:[#allocation8 + $0x1a0] sm:$0xf]
    %v542 = vld [vmem:[#allocation8 + $0x1a4] sm:$0xf]
    %v543 = vld [vmem:[#allocation8 + $0x1a8] sm:$0xf]
    %v544 = vld [vmem:[#allocation8 + $0x1ac] sm:$0xf]
    %v545 = vld [vmem:[#allocation8 + $0x1b0] sm:$0xf]
    %v546 = vld [vmem:[#allocation8 + $0x1b4] sm:$0xf]
    %v547 = vld [vmem:[#allocation8 + $0x1b8] sm:$0xf]
    %v548 = vld [vmem:[#allocation8 + $0x1bc] sm:$0xf]
    %v549 = vld [vmem:[#allocation8 + $0x1c0] sm:$0xf]
    %v550 = vld [vmem:[#allocation8 + $0x1c4] sm:$0xf]
    %v551 = vld [vmem:[#allocation8 + $0x1c8] sm:$0xf]
    %v552 = vld [vmem:[#allocation8 + $0x1cc] sm:$0xf]
    %v553 = vld [vmem:[#allocation8 + $0x1d0] sm:$0xf]
    %v554 = vld [vmem:[#allocation8 + $0x1d4] sm:$0xf]
    %v555 = vld [vmem:[#allocation8 + $0x1d8] sm:$0xf]
    %v556 = vld [vmem:[#allocation8 + $0x1dc] sm:$0xf]
    %v557 = vld [vmem:[#allocation8 + $0x1e0] sm:$0xf]
    %v558 = vld [vmem:[#allocation8 + $0x1e4] sm:$0xf]
    %v559 = vld [vmem:[#allocation8 + $0x1e8] sm:$0xf]
    %v560 = vld [vmem:[#allocation8 + $0x1ec] sm:$0xf]
    %v561 = vld [vmem:[#allocation8 + $0x1f0] sm:$0xf]
    %v562 = vld [vmem:[#allocation8 + $0x1f4] sm:$0xf]
    %v563 = vld [vmem:[#allocation8 + $0x1f8] sm:$0xf]
    %v564 = vld [vmem:[#allocation8 + $0x1fc] sm:$0xf]
    %v565 = vld [vmem:[#allocation8 + $0x200] sm:$0xf]
    %v566 = vld [vmem:[#allocation8 + $0x204] sm:$0xf]
    %v567 = vld [vmem:[#allocation8 + $0x208] sm:$0xf]
    %v568 = vld [vmem:[#allocation8 + $0x20c] sm:$0xf]
    %v569 = vld [vmem:[#allocation8 + $0x210] sm:$0xf]
    %v570 = vld [vmem:[#allocation8 + $0x214] sm:$0xf]
    %v571 = vld [vmem:[#allocation8 + $0x218] sm:$0xf]
    %v572 = vld [vmem:[#allocation8 + $0x21c] sm:$0xf]
    %v573 = vld [vmem:[#allocation8 + $0x220] sm:$0xf]
    %v574 = vld [vmem:[#allocation8 + $0x224] sm:$0xf]
    %v575 = vld [vmem:[#allocation8 + $0x228] sm:$0xf]
    %v576 = vld [vmem:[#allocation8 + $0x22c] sm:$0xf]
    %v577 = vld [vmem:[#allocation8 + $0x230] sm:$0xf]
    %v578 = vld [vmem:[#allocation8 + $0x234] sm:$0xf]
    %v579 = vld [vmem:[#allocation8 + $0x238] sm:$0xf]
    %v580 = vld [vmem:[#allocation8 + $0x23c] sm:$0xf]
    %v581 = vld [vmem:[#allocation8 + $0x240] sm:$0xf]
    %v582 = vld [vmem:[#allocation8 + $0x244] sm:$0xf]
    %v583 = vld [vmem:[#allocation8 + $0x248] sm:$0xf]
    %v584 = vld [vmem:[#allocation8 + $0x24c] sm:$0xf]
    %v585 = vld [vmem:[#allocation8 + $0x250] sm:$0xf]
    %v586 = vld [vmem:[#allocation8 + $0x254] sm:$0xf]
    %v587 = vld [vmem:[#allocation8 + $0x258] sm:$0xf]
    %v588 = vld [vmem:[#allocation8 + $0x25c] sm:$0xf]
    %v589 = vld [vmem:[#allocation8 + $0x260] sm:$0xf]
    %v590 = vld [vmem:[#allocation8 + $0x264] sm:$0xf]
    %v591 = vld [vmem:[#allocation8 + $0x268] sm:$0xf]
    %v592 = vld [vmem:[#allocation8 + $0x26c] sm:$0xf]
    %v593 = vld [vmem:[#allocation8 + $0x270] sm:$0xf]
    %v594 = vld [vmem:[#allocation8 + $0x274] sm:$0xf]
    %v595 = vld [vmem:[#allocation8 + $0x278] sm:$0xf]
    %v596 = vld [vmem:[#allocation8 + $0x27c] sm:$0xf]
    %v597 = vld [vmem:[#allocation8 + $0x280] sm:$0xf]
    %v598 = vld [vmem:[#allocation8 + $0x284] sm:$0xf]
    %v599 = vld [vmem:[#allocation8 + $0x288] sm:$0xf]
    %v600 = vld [vmem:[#allocation8 + $0x28c] sm:$0xf]
    %v601 = vld [vmem:[#allocation8 + $0x290] sm:$0xf]
    %v602 = vld [vmem:[#allocation8 + $0x294] sm:$0xf]
    %v603 = vld [vmem:[#allocation8 + $0x298] sm:$0xf]
    %v604 = vld [vmem:[#allocation8 + $0x29c] sm:$0xf]
    %v605 = vld [vmem:[#allocation8 + $0x2a0] sm:$0xf]
    %v606 = vld [vmem:[#allocation8 + $0x2a4] sm:$0xf]
    %v607 = vld [vmem:[#allocation8 + $0x2a8] sm:$0xf]
    %v608 = vld [vmem:[#allocation8 + $0x2ac] sm:$0xf]
    %v609 = vld [vmem:[#allocation8 + $0x2b0] sm:$0xf]
    %v610 = vld [vmem:[#allocation8 + $0x2b4] sm:$0xf]
    %v611 = vld [vmem:[#allocation8 + $0x2b8] sm:$0xf]
    %v612 = vld [vmem:[#allocation8 + $0x2bc] sm:$0xf]
    %v613 = vld [vmem:[#allocation8 + $0x2c0] sm:$0xf]
    %v614 = vld [vmem:[#allocation8 + $0x2c4] sm:$0xf]
    %v615 = vld [vmem:[#allocation8 + $0x2c8] sm:$0xf]
    %v616 = vld [vmem:[#allocation8 + $0x2cc] sm:$0xf]
    %v617 = vld [vmem:[#allocation8 + $0x2d0] sm:$0xf]
    %v618 = vld [vmem:[#allocation8 + $0x2d4] sm:$0xf]
    %v619 = vld [vmem:[#allocation8 + $0x2d8] sm:$0xf]
    %v620 = vld [vmem:[#allocation8 + $0x2dc] sm:$0xf]
    %v621 = vld [vmem:[#allocation8 + $0x2e0] sm:$0xf]
    %v622 = vld [vmem:[#allocation8 + $0x2e4] sm:$0xf]
    %v623 = vld [vmem:[#allocation8 + $0x2e8] sm:$0xf]
    %v624 = vld [vmem:[#allocation8 + $0x2ec] sm:$0xf]
    %v625 = vld [vmem:[#allocation8 + $0x2f0] sm:$0xf]
    %v626 = vld [vmem:[#allocation8 + $0x2f4] sm:$0xf]
    %v627 = vld [vmem:[#allocation8 + $0x2f8] sm:$0xf]
    %v628 = vld [vmem:[#allocation8 + $0x2fc] sm:$0xf]
    %v629 = vld [vmem:[#allocation8 + $0x300] sm:$0xf]
    %v630 = vld [vmem:[#allocation8 + $0x304] sm:$0xf]
    %v631 = vld [vmem:[#allocation8 + $0x308] sm:$0xf]
    %v632 = vld [vmem:[#allocation8 + $0x30c] sm:$0xf]
    %v633 = vld [vmem:[#allocation8 + $0x310] sm:$0xf]
    %v634 = vld [vmem:[#allocation8 + $0x314] sm:$0xf]
    %v635 = vld [vmem:[#allocation8 + $0x318] sm:$0xf]
    %v636 = vld [vmem:[#allocation8 + $0x31c] sm:$0xf]
    %v637 = vld [vmem:[#allocation8 + $0x320] sm:$0xf]
    %v638 = vld [vmem:[#allocation8 + $0x324] sm:$0xf]
    %v639 = vld [vmem:[#allocation8 + $0x328] sm:$0xf]
    %v640 = vld [vmem:[#allocation8 + $0x32c] sm:$0xf]
    %v641 = vld [vmem:[#allocation8 + $0x330] sm:$0xf]
    %v642 = vld [vmem:[#allocation8 + $0x334] sm:$0xf]
    %v643 = vld [vmem:[#allocation8 + $0x338] sm:$0xf]
    %v644 = vld [vmem:[#allocation8 + $0x33c] sm:$0xf]
    %v645 = vld [vmem:[#allocation8 + $0x340] sm:$0xf]
    %v646 = vld [vmem:[#allocation8 + $0x344] sm:$0xf]
    %v647 = vld [vmem:[#allocation8 + $0x348] sm:$0xf]
    %v648 = vld [vmem:[#allocation8 + $0x34c] sm:$0xf]
    %v649 = vld [vmem:[#allocation8 + $0x350] sm:$0xf]
    %v650 = vld [vmem:[#allocation8 + $0x354] sm:$0xf]
    %v651 = vld [vmem:[#allocation8 + $0x358] sm:$0xf]
    %v652 = vld [vmem:[#allocation8 + $0x35c] sm:$0xf]
    %v653 = vld [vmem:[#allocation8 + $0x360] sm:$0xf]
    %v654 = vld [vmem:[#allocation8 + $0x364] sm:$0xf]
    %v655 = vld [vmem:[#allocation8 + $0x368] sm:$0xf]
    %v656 = vld [vmem:[#allocation8 + $0x36c] sm:$0xf]
    %v657 = vld [vmem:[#allocation8 + $0x370] sm:$0xf]
    %v658 = vld [vmem:[#allocation8 + $0x374] sm:$0xf]
    %v659 = vld [vmem:[#allocation8 + $0x378] sm:$0xf]
    %v660 = vld [vmem:[#allocation8 + $0x37c] sm:$0xf]
    %v661 = vld [vmem:[#allocation8 + $0x380] sm:$0xf]
    %v662 = vld [vmem:[#allocation8 + $0x384] sm:$0xf]
    %v663 = vld [vmem:[#allocation8 + $0x388] sm:$0xf]
    %v664 = vld [vmem:[#allocation8 + $0x38c] sm:$0xf]
    %v665 = vld [vmem:[#allocation8 + $0x390] sm:$0xf]
    %v666 = vld [vmem:[#allocation8 + $0x394] sm:$0xf]
    %v667 = vld [vmem:[#allocation8 + $0x398] sm:$0xf]
    %v668 = vld [vmem:[#allocation8 + $0x39c] sm:$0xf]
    %v669 = vld [vmem:[#allocation8 + $0x3a0] sm:$0xf]
    %v670 = vld [vmem:[#allocation8 + $0x3a4] sm:$0xf]
    %v671 = vld [vmem:[#allocation8 + $0x3a8] sm:$0xf]
    %v672 = vld [vmem:[#allocation8 + $0x3ac] sm:$0xf]
    %v673 = vld [vmem:[#allocation8 + $0x3b0] sm:$0xf]
    %v674 = vld [vmem:[#allocation8 + $0x3b4] sm:$0xf]
    %v675 = vld [vmem:[#allocation8 + $0x3b8] sm:$0xf]
    %v676 = vld [vmem:[#allocation8 + $0x3bc] sm:$0xf]
    %v677 = vld [vmem:[#allocation8 + $0x3c0] sm:$0xf]
    %v678 = vld [vmem:[#allocation8 + $0x3c4] sm:$0xf]
    %v679 = vld [vmem:[#allocation8 + $0x3c8] sm:$0xf]
    %v680 = vld [vmem:[#allocation8 + $0x3cc] sm:$0xf]
    %v681 = vld [vmem:[#allocation8 + $0x3d0] sm:$0xf]
    %v682 = vld [vmem:[#allocation8 + $0x3d4] sm:$0xf]
    %v683 = vld [vmem:[#allocation8 + $0x3d8] sm:$0xf]
    %v684 = vld [vmem:[#allocation8 + $0x3dc] sm:$0xf]
    %v685 = vld [vmem:[#allocation8 + $0x3e0] sm:$0xf]
    %v686 = vld [vmem:[#allocation8 + $0x3e4] sm:$0xf]
    %v687 = vld [vmem:[#allocation8 + $0x3e8] sm:$0xf]
    %v688 = vld [vmem:[#allocation8 + $0x3ec] sm:$0xf]
    %v689 = vld [vmem:[#allocation8 + $0x3f0] sm:$0xf]
    %v690 = vld [vmem:[#allocation8 + $0x3f4] sm:$0xf]
    %v691 = vld [vmem:[#allocation8 + $0x3f8] sm:$0xf]
    %v692 = vld [vmem:[#allocation8 + $0x3fc] sm:$0xf]
    %v693 = vld [vmem:[#allocation8 + $0x400] sm:$0xf]
    %v694 = vld [vmem:[#allocation8 + $0x404] sm:$0xf]
    %v695 = vld [vmem:[#allocation8 + $0x408] sm:$0xf]
    %v696 = vld [vmem:[#allocation8 + $0x40c] sm:$0xf]
    %v697 = vld [vmem:[#allocation8 + $0x410] sm:$0xf]
    %v698 = vld [vmem:[#allocation8 + $0x414] sm:$0xf]
    %v699 = vld [vmem:[#allocation8 + $0x418] sm:$0xf]
    %v700 = vld [vmem:[#allocation8 + $0x41c] sm:$0xf]
    %v701 = vld [vmem:[#allocation8 + $0x420] sm:$0xf]
    %v702 = vld [vmem:[#allocation8 + $0x424] sm:$0xf]
    %v703 = vld [vmem:[#allocation8 + $0x428] sm:$0xf]
    %v704 = vld [vmem:[#allocation8 + $0x42c] sm:$0xf]
    %v705 = vld [vmem:[#allocation8 + $0x430] sm:$0xf]
    %v706 = vld [vmem:[#allocation8 + $0x434] sm:$0xf]
    %v707 = vld [vmem:[#allocation8 + $0x438] sm:$0xf]
    %v708 = vld [vmem:[#allocation8 + $0x43c] sm:$0xf]
    %v709 = vld [vmem:[#allocation8 + $0x440] sm:$0xf]
    %v710 = vld [vmem:[#allocation8 + $0x444] sm:$0xf]
    %v711 = vld [vmem:[#allocation8 + $0x448] sm:$0xf]
    %v712 = vld [vmem:[#allocation8 + $0x44c] sm:$0xf]
    %v713 = vld [vmem:[#allocation8 + $0x450] sm:$0xf]
    %v714 = vld [vmem:[#allocation8 + $0x454] sm:$0xf]
    %v715 = vld [vmem:[#allocation8 + $0x458] sm:$0xf]
    %v716 = vld [vmem:[#allocation8 + $0x45c] sm:$0xf]
    %v717 = vld [vmem:[#allocation8 + $0x460] sm:$0xf]
    %v718 = vld [vmem:[#allocation8 + $0x464] sm:$0xf]
    %v719 = vld [vmem:[#allocation8 + $0x468] sm:$0xf]
    %v720 = vld [vmem:[#allocation8 + $0x46c] sm:$0xf]
    %v721 = vld [vmem:[#allocation8 + $0x470] sm:$0xf]
    %v722 = vld [vmem:[#allocation8 + $0x474] sm:$0xf]
    %v723 = vld [vmem:[#allocation8 + $0x478] sm:$0xf]
    %v724 = vld [vmem:[#allocation8 + $0x47c] sm:$0xf]
    %v1013 = vunpack.c.l.b16 %v149
    %v1014 = vunpack.c.l.b16 %v150
    %v1015 = vunpack.c.l.b16 %v151
    %v1016 = vunpack.c.l.b16 %v152
    %v1017 = vunpack.c.l.b16 %v153
    %v1018 = vunpack.c.l.b16 %v154
    %v1019 = vunpack.c.l.b16 %v155
    %v1020 = vunpack.c.l.b16 %v156
    %v1021 = vunpack.c.l.b16 %v157
    %v1022 = vunpack.c.l.b16 %v158
    %v1023 = vunpack.c.l.b16 %v159
    %v1024 = vunpack.c.l.b16 %v160
    %v1025 = vunpack.c.l.b16 %v161
    %v1026 = vunpack.c.l.b16 %v162
    %v1027 = vunpack.c.l.b16 %v163
    %v1028 = vunpack.c.l.b16 %v164
    %v1029 = vunpack.c.l.b16 %v165
    %v1030 = vunpack.c.l.b16 %v166
    %v1031 = vunpack.c.l.b16 %v167
    %v1032 = vunpack.c.l.b16 %v168
    %v1033 = vunpack.c.l.b16 %v169
    %v1034 = vunpack.c.l.b16 %v170
    %v1035 = vunpack.c.l.b16 %v171
    %v1036 = vunpack.c.l.b16 %v172
    %v1037 = vunpack.c.l.b16 %v173
    %v1038 = vunpack.c.l.b16 %v174
    %v1039 = vunpack.c.l.b16 %v175
    %v1040 = vunpack.c.l.b16 %v176
    %v1041 = vunpack.c.l.b16 %v177
    %v1042 = vunpack.c.l.b16 %v178
    %v1043 = vunpack.c.l.b16 %v179
    %v1044 = vunpack.c.l.b16 %v180
    %v1045 = vunpack.c.l.b16 %v181
    %v1046 = vunpack.c.l.b16 %v182
    %v1047 = vunpack.c.l.b16 %v183
    %v1048 = vunpack.c.l.b16 %v184
    %v1049 = vunpack.c.l.b16 %v185
    %v1050 = vunpack.c.l.b16 %v186
    %v1051 = vunpack.c.l.b16 %v187
    %v1052 = vunpack.c.l.b16 %v188
    %v1053 = vunpack.c.l.b16 %v189
    %v1054 = vunpack.c.l.b16 %v190
    %v1055 = vunpack.c.l.b16 %v191
    %v1056 = vunpack.c.l.b16 %v192
    %v1057 = vunpack.c.l.b16 %v193
    %v1058 = vunpack.c.l.b16 %v194
    %v1059 = vunpack.c.l.b16 %v195
    %v1060 = vunpack.c.l.b16 %v196
    %v1061 = vunpack.c.l.b16 %v197
    %v1062 = vunpack.c.l.b16 %v198
    %v1063 = vunpack.c.l.b16 %v199
    %v1064 = vunpack.c.l.b16 %v200
    %v1065 = vunpack.c.l.b16 %v201
    %v1066 = vunpack.c.l.b16 %v202
    %v1067 = vunpack.c.l.b16 %v203
    %v1068 = vunpack.c.l.b16 %v204
    %v1069 = vunpack.c.l.b16 %v205
    %v1070 = vunpack.c.l.b16 %v206
    %v1071 = vunpack.c.l.b16 %v207
    %v1072 = vunpack.c.l.b16 %v208
    %v1073 = vunpack.c.l.b16 %v209
    %v1074 = vunpack.c.l.b16 %v210
    %v1075 = vunpack.c.l.b16 %v211
    %v1076 = vunpack.c.l.b16 %v212
    %v1077 = vunpack.c.l.b16 %v213
    %v1078 = vunpack.c.l.b16 %v214
    %v1079 = vunpack.c.l.b16 %v215
    %v1080 = vunpack.c.l.b16 %v216
    %v1081 = vunpack.c.l.b16 %v217
    %v1082 = vunpack.c.l.b16 %v218
    %v1083 = vunpack.c.l.b16 %v219
    %v1084 = vunpack.c.l.b16 %v220
    %v1085 = vunpack.c.l.b16 %v221
    %v1086 = vunpack.c.l.b16 %v222
    %v1087 = vunpack.c.l.b16 %v223
    %v1088 = vunpack.c.l.b16 %v224
    %v1089 = vunpack.c.l.b16 %v225
    %v1090 = vunpack.c.l.b16 %v226
    %v1091 = vunpack.c.l.b16 %v227
    %v1092 = vunpack.c.l.b16 %v228
    %v1093 = vunpack.c.l.b16 %v229
    %v1094 = vunpack.c.l.b16 %v230
    %v1095 = vunpack.c.l.b16 %v231
    %v1096 = vunpack.c.l.b16 %v232
    %v1097 = vunpack.c.l.b16 %v233
    %v1098 = vunpack.c.l.b16 %v234
    %v1099 = vunpack.c.l.b16 %v235
    %v1100 = vunpack.c.l.b16 %v236
    %v1101 = vunpack.c.l.b16 %v237
    %v1102 = vunpack.c.l.b16 %v238
    %v1103 = vunpack.c.l.b16 %v239
    %v1104 = vunpack.c.l.b16 %v240
    %v1105 = vunpack.c.l.b16 %v241
    %v1106 = vunpack.c.l.b16 %v242
    %v1107 = vunpack.c.l.b16 %v243
    %v1108 = vunpack.c.l.b16 %v244
    %v1109 = vunpack.c.l.b16 %v245
    %v1110 = vunpack.c.l.b16 %v246
    %v1111 = vunpack.c.l.b16 %v247
    %v1112 = vunpack.c.l.b16 %v248
    %v1113 = vunpack.c.l.b16 %v249
    %v1114 = vunpack.c.l.b16 %v250
    %v1115 = vunpack.c.l.b16 %v251
    %v1116 = vunpack.c.l.b16 %v252
    %v1117 = vunpack.c.l.b16 %v253
    %v1118 = vunpack.c.l.b16 %v254
    %v1119 = vunpack.c.l.b16 %v255
    %v1120 = vunpack.c.l.b16 %v256
    %v1121 = vunpack.c.l.b16 %v257
    %v1122 = vunpack.c.l.b16 %v258
    %v1123 = vunpack.c.l.b16 %v259
    %v1124 = vunpack.c.l.b16 %v260
    %v1125 = vunpack.c.l.b16 %v261
    %v1126 = vunpack.c.l.b16 %v262
    %v1127 = vunpack.c.l.b16 %v263
    %v1128 = vunpack.c.l.b16 %v264
    %v1129 = vunpack.c.l.b16 %v265
    %v1130 = vunpack.c.l.b16 %v266
    %v1131 = vunpack.c.l.b16 %v267
    %v1132 = vunpack.c.l.b16 %v268
    %v1133 = vunpack.c.l.b16 %v269
    %v1134 = vunpack.c.l.b16 %v270
    %v1135 = vunpack.c.l.b16 %v271
    %v1136 = vunpack.c.l.b16 %v272
    %v1137 = vunpack.c.l.b16 %v273
    %v1138 = vunpack.c.l.b16 %v274
    %v1139 = vunpack.c.l.b16 %v275
    %v1140 = vunpack.c.l.b16 %v276
    %v1141 = vunpack.c.l.b16 %v277
    %v1142 = vunpack.c.l.b16 %v278
    %v1143 = vunpack.c.l.b16 %v279
    %v1144 = vunpack.c.l.b16 %v280
    %v1145 = vunpack.c.l.b16 %v281
    %v1146 = vunpack.c.l.b16 %v282
    %v1147 = vunpack.c.l.b16 %v283
    %v1148 = vunpack.c.l.b16 %v284
    %v1149 = vunpack.c.l.b16 %v285
    %v1150 = vunpack.c.l.b16 %v286
    %v1151 = vunpack.c.l.b16 %v287
    %v1152 = vunpack.c.l.b16 %v288
    %v1153 = vunpack.c.l.b16 %v289
    %v1154 = vunpack.c.l.b16 %v290
    %v1155 = vunpack.c.l.b16 %v291
    %v1156 = vunpack.c.l.b16 %v292
    %v1157 = vunpack.c.l.b16 %v293
    %v1158 = vunpack.c.l.b16 %v294
    %v1159 = vunpack.c.l.b16 %v295
    %v1160 = vunpack.c.l.b16 %v296
    %v1161 = vunpack.c.l.b16 %v297
    %v1162 = vunpack.c.l.b16 %v298
    %v1163 = vunpack.c.l.b16 %v299
    %v1164 = vunpack.c.l.b16 %v300
    %v1165 = vunpack.c.l.b16 %v301
    %v1166 = vunpack.c.l.b16 %v302
    %v1167 = vunpack.c.l.b16 %v303
    %v1168 = vunpack.c.l.b16 %v304
    %v1169 = vunpack.c.l.b16 %v305
    %v1170 = vunpack.c.l.b16 %v306
    %v1171 = vunpack.c.l.b16 %v307
    %v1172 = vunpack.c.l.b16 %v308
    %v1173 = vunpack.c.l.b16 %v309
    %v1174 = vunpack.c.l.b16 %v310
    %v1175 = vunpack.c.l.b16 %v311
    %v1176 = vunpack.c.l.b16 %v312
    %v1177 = vunpack.c.l.b16 %v313
    %v1178 = vunpack.c.l.b16 %v314
    %v1179 = vunpack.c.l.b16 %v315
    %v1180 = vunpack.c.l.b16 %v316
    %v1181 = vunpack.c.l.b16 %v317
    %v1182 = vunpack.c.l.b16 %v318
    %v1183 = vunpack.c.l.b16 %v319
    %v1184 = vunpack.c.l.b16 %v320
    %v1185 = vunpack.c.l.b16 %v321
    %v1186 = vunpack.c.l.b16 %v322
    %v1187 = vunpack.c.l.b16 %v323
    %v1188 = vunpack.c.l.b16 %v324
    %v1189 = vunpack.c.l.b16 %v325
    %v1190 = vunpack.c.l.b16 %v326
    %v1191 = vunpack.c.l.b16 %v327
    %v1192 = vunpack.c.l.b16 %v328
    %v1193 = vunpack.c.l.b16 %v329
    %v1194 = vunpack.c.l.b16 %v330
    %v1195 = vunpack.c.l.b16 %v331
    %v1196 = vunpack.c.l.b16 %v332
    %v1197 = vunpack.c.l.b16 %v333
    %v1198 = vunpack.c.l.b16 %v334
    %v1199 = vunpack.c.l.b16 %v335
    %v1200 = vunpack.c.l.b16 %v336
    %v1201 = vunpack.c.l.b16 %v337
    %v1202 = vunpack.c.l.b16 %v338
    %v1203 = vunpack.c.l.b16 %v339
    %v1204 = vunpack.c.l.b16 %v340
    %v1205 = vunpack.c.l.b16 %v341
    %v1206 = vunpack.c.l.b16 %v342
    %v1207 = vunpack.c.l.b16 %v343
    %v1208 = vunpack.c.l.b16 %v344
    %v1209 = vunpack.c.l.b16 %v345
    %v1210 = vunpack.c.l.b16 %v346
    %v1211 = vunpack.c.l.b16 %v347
    %v1212 = vunpack.c.l.b16 %v348
    %v1213 = vunpack.c.l.b16 %v349
    %v1214 = vunpack.c.l.b16 %v350
    %v1215 = vunpack.c.l.b16 %v351
    %v1216 = vunpack.c.l.b16 %v352
    %v1217 = vunpack.c.l.b16 %v353
    %v1218 = vunpack.c.l.b16 %v354
    %v1219 = vunpack.c.l.b16 %v355
    %v1220 = vunpack.c.l.b16 %v356
    %v1221 = vunpack.c.l.b16 %v357
    %v1222 = vunpack.c.l.b16 %v358
    %v1223 = vunpack.c.l.b16 %v359
    %v1224 = vunpack.c.l.b16 %v360
    %v1225 = vunpack.c.l.b16 %v361
    %v1226 = vunpack.c.l.b16 %v362
    %v1227 = vunpack.c.l.b16 %v363
    %v1228 = vunpack.c.l.b16 %v364
    %v1229 = vunpack.c.l.b16 %v365
    %v1230 = vunpack.c.l.b16 %v366
    %v1231 = vunpack.c.l.b16 %v367
    %v1232 = vunpack.c.l.b16 %v368
    %v1233 = vunpack.c.l.b16 %v369
    %v1234 = vunpack.c.l.b16 %v370
    %v1235 = vunpack.c.l.b16 %v371
    %v1236 = vunpack.c.l.b16 %v372
    %v1237 = vunpack.c.l.b16 %v373
    %v1238 = vunpack.c.l.b16 %v374
    %v1239 = vunpack.c.l.b16 %v375
    %v1240 = vunpack.c.l.b16 %v376
    %v1241 = vunpack.c.l.b16 %v377
    %v1242 = vunpack.c.l.b16 %v378
    %v1243 = vunpack.c.l.b16 %v379
    %v1244 = vunpack.c.l.b16 %v380
    %v1245 = vunpack.c.l.b16 %v381
    %v1246 = vunpack.c.l.b16 %v382
    %v1247 = vunpack.c.l.b16 %v383
    %v1248 = vunpack.c.l.b16 %v384
    %v1249 = vunpack.c.l.b16 %v385
    %v1250 = vunpack.c.l.b16 %v386
    %v1251 = vunpack.c.l.b16 %v387
    %v1252 = vunpack.c.l.b16 %v388
    %v1253 = vunpack.c.l.b16 %v389
    %v1254 = vunpack.c.l.b16 %v390
    %v1255 = vunpack.c.l.b16 %v391
    %v1256 = vunpack.c.l.b16 %v392
    %v1257 = vunpack.c.l.b16 %v393
    %v1258 = vunpack.c.l.b16 %v394
    %v1259 = vunpack.c.l.b16 %v395
    %v1260 = vunpack.c.l.b16 %v396
    %v1261 = vunpack.c.l.b16 %v397
    %v1262 = vunpack.c.l.b16 %v398
    %v1263 = vunpack.c.l.b16 %v399
    %v1264 = vunpack.c.l.b16 %v400
    %v1265 = vunpack.c.l.b16 %v401
    %v1266 = vunpack.c.l.b16 %v402
    %v1267 = vunpack.c.l.b16 %v403
    %v1268 = vunpack.c.l.b16 %v404
    %v1269 = vunpack.c.l.b16 %v405
    %v1270 = vunpack.c.l.b16 %v406
    %v1271 = vunpack.c.l.b16 %v407
    %v1272 = vunpack.c.l.b16 %v408
    %v1273 = vunpack.c.l.b16 %v409
    %v1274 = vunpack.c.l.b16 %v410
    %v1275 = vunpack.c.l.b16 %v411
    %v1276 = vunpack.c.l.b16 %v412
    %v1277 = vunpack.c.l.b16 %v413
    %v1278 = vunpack.c.l.b16 %v414
    %v1279 = vunpack.c.l.b16 %v415
    %v1280 = vunpack.c.l.b16 %v416
    %v1281 = vunpack.c.l.b16 %v417
    %v1282 = vunpack.c.l.b16 %v418
    %v1283 = vunpack.c.l.b16 %v419
    %v1284 = vunpack.c.l.b16 %v420
    %v1285 = vunpack.c.l.b16 %v421
    %v1286 = vunpack.c.l.b16 %v422
    %v1287 = vunpack.c.l.b16 %v423
    %v1288 = vunpack.c.l.b16 %v424
    %v1289 = vunpack.c.l.b16 %v425
    %v1290 = vunpack.c.l.b16 %v426
    %v1291 = vunpack.c.l.b16 %v427
    %v1292 = vunpack.c.l.b16 %v428
    %v1293 = vunpack.c.l.b16 %v429
    %v1294 = vunpack.c.l.b16 %v430
    %v1295 = vunpack.c.l.b16 %v431
    %v1296 = vunpack.c.l.b16 %v432
    %v1297 = vunpack.c.l.b16 %v433
    %v1298 = vunpack.c.l.b16 %v434
    %v1299 = vunpack.c.l.b16 %v435
    %v1300 = vunpack.c.l.b16 %v436
    %v1301 = vpack.c.b16 %v1014, %v1013
    %v1302 = vpack.c.b16 %v1016, %v1015
    %v1303 = vpack.c.b16 %v1018, %v1017
    %v1304 = vpack.c.b16 %v1020, %v1019
    %v1305 = vpack.c.b16 %v1022, %v1021
    %v1306 = vpack.c.b16 %v1024, %v1023
    %v1307 = vpack.c.b16 %v1026, %v1025
    %v1308 = vpack.c.b16 %v1028, %v1027
    %v1309 = vpack.c.b16 %v1030, %v1029
    %v1310 = vpack.c.b16 %v1032, %v1031
    %v1311 = vpack.c.b16 %v1034, %v1033
    %v1312 = vpack.c.b16 %v1036, %v1035
    %v1313 = vpack.c.b16 %v1038, %v1037
    %v1314 = vpack.c.b16 %v1040, %v1039
    %v1315 = vpack.c.b16 %v1042, %v1041
    %v1316 = vpack.c.b16 %v1044, %v1043
    %v1317 = vpack.c.b16 %v1046, %v1045
    %v1318 = vpack.c.b16 %v1048, %v1047
    %v1319 = vpack.c.b16 %v1050, %v1049
    %v1320 = vpack.c.b16 %v1052, %v1051
    %v1321 = vpack.c.b16 %v1054, %v1053
    %v1322 = vpack.c.b16 %v1056, %v1055
    %v1323 = vpack.c.b16 %v1058, %v1057
    %v1324 = vpack.c.b16 %v1060, %v1059
    %v1325 = vpack.c.b16 %v1062, %v1061
    %v1326 = vpack.c.b16 %v1064, %v1063
    %v1327 = vpack.c.b16 %v1066, %v1065
    %v1328 = vpack.c.b16 %v1068, %v1067
    %v1329 = vpack.c.b16 %v1070, %v1069
    %v1330 = vpack.c.b16 %v1072, %v1071
    %v1331 = vpack.c.b16 %v1074, %v1073
    %v1332 = vpack.c.b16 %v1076, %v1075
    %v1333 = vpack.c.b16 %v1078, %v1077
    %v1334 = vpack.c.b16 %v1080, %v1079
    %v1335 = vpack.c.b16 %v1082, %v1081
    %v1336 = vpack.c.b16 %v1084, %v1083
    %v1337 = vpack.c.b16 %v1086, %v1085
    %v1338 = vpack.c.b16 %v1088, %v1087
    %v1339 = vpack.c.b16 %v1090, %v1089
    %v1340 = vpack.c.b16 %v1092, %v1091
    %v1341 = vpack.c.b16 %v1094, %v1093
    %v1342 = vpack.c.b16 %v1096, %v1095
    %v1343 = vpack.c.b16 %v1098, %v1097
    %v1344 = vpack.c.b16 %v1100, %v1099
    %v1345 = vpack.c.b16 %v1102, %v1101
    %v1346 = vpack.c.b16 %v1104, %v1103
    %v1347 = vpack.c.b16 %v1106, %v1105
    %v1348 = vpack.c.b16 %v1108, %v1107
    %v1349 = vpack.c.b16 %v1110, %v1109
    %v1350 = vpack.c.b16 %v1112, %v1111
    %v1351 = vpack.c.b16 %v1114, %v1113
    %v1352 = vpack.c.b16 %v1116, %v1115
    %v1353 = vpack.c.b16 %v1118, %v1117
    %v1354 = vpack.c.b16 %v1120, %v1119
    %v1355 = vpack.c.b16 %v1122, %v1121
    %v1356 = vpack.c.b16 %v1124, %v1123
    %v1357 = vpack.c.b16 %v1126, %v1125
    %v1358 = vpack.c.b16 %v1128, %v1127
    %v1359 = vpack.c.b16 %v1130, %v1129
    %v1360 = vpack.c.b16 %v1132, %v1131
    %v1361 = vpack.c.b16 %v1134, %v1133
    %v1362 = vpack.c.b16 %v1136, %v1135
    %v1363 = vpack.c.b16 %v1138, %v1137
    %v1364 = vpack.c.b16 %v1140, %v1139
    %v1365 = vpack.c.b16 %v1142, %v1141
    %v1366 = vpack.c.b16 %v1144, %v1143
    %v1367 = vpack.c.b16 %v1146, %v1145
    %v1368 = vpack.c.b16 %v1148, %v1147
    %v1369 = vpack.c.b16 %v1150, %v1149
    %v1370 = vpack.c.b16 %v1152, %v1151
    %v1371 = vpack.c.b16 %v1154, %v1153
    %v1372 = vpack.c.b16 %v1156, %v1155
    %v1373 = vpack.c.b16 %v1158, %v1157
    %v1374 = vpack.c.b16 %v1160, %v1159
    %v1375 = vpack.c.b16 %v1162, %v1161
    %v1376 = vpack.c.b16 %v1164, %v1163
    %v1377 = vpack.c.b16 %v1166, %v1165
    %v1378 = vpack.c.b16 %v1168, %v1167
    %v1379 = vpack.c.b16 %v1170, %v1169
    %v1380 = vpack.c.b16 %v1172, %v1171
    %v1381 = vpack.c.b16 %v1174, %v1173
    %v1382 = vpack.c.b16 %v1176, %v1175
    %v1383 = vpack.c.b16 %v1178, %v1177
    %v1384 = vpack.c.b16 %v1180, %v1179
    %v1385 = vpack.c.b16 %v1182, %v1181
    %v1386 = vpack.c.b16 %v1184, %v1183
    %v1387 = vpack.c.b16 %v1186, %v1185
    %v1388 = vpack.c.b16 %v1188, %v1187
    %v1389 = vpack.c.b16 %v1190, %v1189
    %v1390 = vpack.c.b16 %v1192, %v1191
    %v1391 = vpack.c.b16 %v1194, %v1193
    %v1392 = vpack.c.b16 %v1196, %v1195
    %v1393 = vpack.c.b16 %v1198, %v1197
    %v1394 = vpack.c.b16 %v1200, %v1199
    %v1395 = vpack.c.b16 %v1202, %v1201
    %v1396 = vpack.c.b16 %v1204, %v1203
    %v1397 = vpack.c.b16 %v1206, %v1205
    %v1398 = vpack.c.b16 %v1208, %v1207
    %v1399 = vpack.c.b16 %v1210, %v1209
    %v1400 = vpack.c.b16 %v1212, %v1211
    %v1401 = vpack.c.b16 %v1214, %v1213
    %v1402 = vpack.c.b16 %v1216, %v1215
    %v1403 = vpack.c.b16 %v1218, %v1217
    %v1404 = vpack.c.b16 %v1220, %v1219
    %v1405 = vpack.c.b16 %v1222, %v1221
    %v1406 = vpack.c.b16 %v1224, %v1223
    %v1407 = vpack.c.b16 %v1226, %v1225
    %v1408 = vpack.c.b16 %v1228, %v1227
    %v1409 = vpack.c.b16 %v1230, %v1229
    %v1410 = vpack.c.b16 %v1232, %v1231
    %v1411 = vpack.c.b16 %v1234, %v1233
    %v1412 = vpack.c.b16 %v1236, %v1235
    %v1413 = vpack.c.b16 %v1238, %v1237
    %v1414 = vpack.c.b16 %v1240, %v1239
    %v1415 = vpack.c.b16 %v1242, %v1241
    %v1416 = vpack.c.b16 %v1244, %v1243
    %v1417 = vpack.c.b16 %v1246, %v1245
    %v1418 = vpack.c.b16 %v1248, %v1247
    %v1419 = vpack.c.b16 %v1250, %v1249
    %v1420 = vpack.c.b16 %v1252, %v1251
    %v1421 = vpack.c.b16 %v1254, %v1253
    %v1422 = vpack.c.b16 %v1256, %v1255
    %v1423 = vpack.c.b16 %v1258, %v1257
    %v1424 = vpack.c.b16 %v1260, %v1259
    %v1425 = vpack.c.b16 %v1262, %v1261
    %v1426 = vpack.c.b16 %v1264, %v1263
    %v1427 = vpack.c.b16 %v1266, %v1265
    %v1428 = vpack.c.b16 %v1268, %v1267
    %v1429 = vpack.c.b16 %v1270, %v1269
    %v1430 = vpack.c.b16 %v1272, %v1271
    %v1431 = vpack.c.b16 %v1274, %v1273
    %v1432 = vpack.c.b16 %v1276, %v1275
    %v1433 = vpack.c.b16 %v1278, %v1277
    %v1434 = vpack.c.b16 %v1280, %v1279
    %v1435 = vpack.c.b16 %v1282, %v1281
    %v1436 = vpack.c.b16 %v1284, %v1283
    %v1437 = vpack.c.b16 %v1286, %v1285
    %v1438 = vpack.c.b16 %v1288, %v1287
    %v1439 = vpack.c.b16 %v1290, %v1289
    %v1440 = vpack.c.b16 %v1292, %v1291
    %v1441 = vpack.c.b16 %v1294, %v1293
    %v1442 = vpack.c.b16 %v1296, %v1295
    %v1443 = vpack.c.b16 %v1298, %v1297
    %v1444 = vpack.c.b16 %v1300, %v1299
    %1589 = vmatprep.subr.bf16.mxu0 0
    %1590 = vmatpush1.bf16.msra.mxu0 %v1301
    %1591 = vmatprep.subr.bf16.mxu0 0
    %1592 = vmatpush1.bf16.msra.mxu0 %v1302
    %1593 = vmatprep.subr.bf16.mxu0 0
    %1594 = vmatpush1.bf16.msra.mxu0 %v1303
    %1595 = vmatprep.subr.bf16.mxu0 0
    %1596 = vmatpush1.bf16.msra.mxu0 %v1304
    %1597 = vmatprep.subr.bf16.mxu0 0
    %1598 = vmatpush1.bf16.msra.mxu0 %v1305
    %1599 = vmatprep.subr.bf16.mxu0 0
    %1600 = vmatpush1.bf16.msra.mxu0 %v1306
    %1601 = vmatprep.subr.bf16.mxu0 0
    %1602 = vmatpush1.bf16.msra.mxu0 %v1307
    %1603 = vmatprep.subr.bf16.mxu0 0
    %1604 = vmatpush1.bf16.msra.mxu0 %v1308
    %1605 = vmatprep.subr.bf16.mxu0 0
    %1606 = vmatpush1.bf16.msra.mxu0 %v1309
    %1607 = vmatprep.subr.bf16.mxu0 0
    %1608 = vmatpush1.bf16.msra.mxu0 %v1310
    %1609 = vmatprep.subr.bf16.mxu0 0
    %1610 = vmatpush1.bf16.msra.mxu0 %v1311
    %1611 = vmatprep.subr.bf16.mxu0 0
    %1612 = vmatpush1.bf16.msra.mxu0 %v1312
    %1613 = vmatprep.subr.bf16.mxu0 0
    %1614 = vmatpush1.bf16.msra.mxu0 %v1313
    %1615 = vmatprep.subr.bf16.mxu0 0
    %1616 = vmatpush1.bf16.msra.mxu0 %v1314
    %1617 = vmatprep.subr.bf16.mxu0 0
    %1618 = vmatpush1.bf16.msra.mxu0 %v1315
    %1619 = vmatprep.subr.bf16.mxu0 0
    %1620 = vmatpush1.bf16.msra.mxu0 %v1316
    %1621 = vmatprep.mubr.bf16.mxu0 %v132
    %1622 = vmatmul.mubr.bf16.gmra.mrb[0].mxu0 %v131
    %v1623 = vpop.f32.mrb[0].mxu0
    %v1624 = vadd.f32 0.0, %v1623
    %v1625 = vpop.f32.mrb[0].mxu0
    %v1626 = vpop.f32.mrb[0].mxu0
    %v1627 = vpop.f32.mrb[0].mxu0
    %1628 = vdwg.mxu0
    %1629 = vmatprep.subr.bf16.mxu0 0
    %1630 = vmatpush1.bf16.msra.mxu0 %v1317
    %1631 = vmatprep.subr.bf16.mxu0 0
    %1632 = vmatpush1.bf16.msra.mxu0 %v1318
    %1633 = vmatprep.subr.bf16.mxu0 0
    %1634 = vmatpush1.bf16.msra.mxu0 %v1319
    %1635 = vmatprep.subr.bf16.mxu0 0
    %1636 = vmatpush1.bf16.msra.mxu0 %v1320
    %1637 = vmatprep.subr.bf16.mxu0 0
    %1638 = vmatpush1.bf16.msra.mxu0 %v1321
    %1639 = vmatprep.subr.bf16.mxu0 0
    %1640 = vmatpush1.bf16.msra.mxu0 %v1322
    %1641 = vmatprep.subr.bf16.mxu0 0
    %1642 = vmatpush1.bf16.msra.mxu0 %v1323
    %1643 = vmatprep.subr.bf16.mxu0 0
    %1644 = vmatpush1.bf16.msra.mxu0 %v1324
    %1645 = vmatprep.subr.bf16.mxu0 0
    %1646 = vmatpush1.bf16.msra.mxu0 %v1325
    %1647 = vmatprep.subr.bf16.mxu0 0
    %1648 = vmatpush1.bf16.msra.mxu0 %v1326
    %1649 = vmatprep.subr.bf16.mxu0 0
    %1650 = vmatpush1.bf16.msra.mxu0 %v1327
    %1651 = vmatprep.subr.bf16.mxu0 0
    %1652 = vmatpush1.bf16.msra.mxu0 %v1328
    %1653 = vmatprep.subr.bf16.mxu0 0
    %1654 = vmatpush1.bf16.msra.mxu0 %v1329
    %1655 = vmatprep.subr.bf16.mxu0 0
    %1656 = vmatpush1.bf16.msra.mxu0 %v1330
    %1657 = vmatprep.subr.bf16.mxu0 0
    %1658 = vmatpush1.bf16.msra.mxu0 %v1331
    %1659 = vmatprep.subr.bf16.mxu0 0
    %1660 = vmatpush1.bf16.msra.mxu0 %v1332
    %1661 = vmatprep.mubr.bf16.mxu0 %v134
    %1662 = vmatmul.mubr.bf16.gmra.mrb[0].mxu0 %v133
    %v1663 = vpop.f32.mrb[0].mxu0
    %v1664 = vadd.f32 %v1624, %v1663
    %v1665 = vpop.f32.mrb[0].mxu0
    %v1666 = vpop.f32.mrb[0].mxu0
    %v1667 = vpop.f32.mrb[0].mxu0
    %1668 = vdwg.mxu0
    %1669 = vmatprep.subr.bf16.mxu0 0
    %1670 = vmatpush1.bf16.msra.mxu0 %v1333
    %1671 = vmatprep.subr.bf16.mxu0 0
    %1672 = vmatpush1.bf16.msra.mxu0 %v1334
    %1673 = vmatprep.subr.bf16.mxu0 0
    %1674 = vmatpush1.bf16.msra.mxu0 %v1335
    %1675 = vmatprep.subr.bf16.mxu0 0
    %1676 = vmatpush1.bf16.msra.mxu0 %v1336
    %1677 = vmatprep.subr.bf16.mxu0 0
    %1678 = vmatpush1.bf16.msra.mxu0 %v1337
    %1679 = vmatprep.subr.bf16.mxu0 0
    %1680 = vmatpush1.bf16.msra.mxu0 %v1338
    %1681 = vmatprep.subr.bf16.mxu0 0
    %1682 = vmatpush1.bf16.msra.mxu0 %v1339
    %1683 = vmatprep.subr.bf16.mxu0 0
    %1684 = vmatpush1.bf16.msra.mxu0 %v1340
    %1685 = vmatprep.subr.bf16.mxu0 0
    %1686 = vmatpush1.bf16.msra.mxu0 %v1341
    %1687 = vmatprep.subr.bf16.mxu0 0
    %1688 = vmatpush1.bf16.msra.mxu0 %v1342
    %1689 = vmatprep.subr.bf16.mxu0 0
    %1690 = vmatpush1.bf16.msra.mxu0 %v1343
    %1691 = vmatprep.subr.bf16.mxu0 0
    %1692 = vmatpush1.bf16.msra.mxu0 %v1344
    %1693 = vmatprep.subr.bf16.mxu0 0
    %1694 = vmatpush1.bf16.msra.mxu0 %v1345
    %1695 = vmatprep.subr.bf16.mxu0 0
    %1696 = vmatpush1.bf16.msra.mxu0 %v1346
    %1697 = vmatprep.subr.bf16.mxu0 0
    %1698 = vmatpush1.bf16.msra.mxu0 %v1347
    %1699 = vmatprep.subr.bf16.mxu0 0
    %1700 = vmatpush1.bf16.msra.mxu0 %v1348
    %1701 = vmatprep.mubr.bf16.mxu0 %v136
    %1702 = vmatmul.mubr.bf16.gmra.mrb[0].mxu0 %v135
    %v1703 = vpop.f32.mrb[0].mxu0
    %v1704 = vadd.f32 %v1664, %v1703
    %v1705 = vpop.f32.mrb[0].mxu0
    %v1706 = vpop.f32.mrb[0].mxu0
    %v1707 = vpop.f32.mrb[0].mxu0
    %1708 = vdwg.mxu0
    %1709 = vmatprep.subr.bf16.mxu0 0
    %1710 = vmatpush1.bf16.msra.mxu0 %v1349
    %1711 = vmatprep.subr.bf16.mxu0 0
    %1712 = vmatpush1.bf16.msra.mxu0 %v1350
    %1713 = vmatprep.subr.bf16.mxu0 0
    %1714 = vmatpush1.bf16.msra.mxu0 %v1351
    %1715 = vmatprep.subr.bf16.mxu0 0
    %1716 = vmatpush1.bf16.msra.mxu0 %v1352
    %1717 = vmatprep.subr.bf16.mxu0 0
    %1718 = vmatpush1.bf16.msra.mxu0 %v1353
    %1719 = vmatprep.subr.bf16.mxu0 0
    %1720 = vmatpush1.bf16.msra.mxu0 %v1354
    %1721 = vmatprep.subr.bf16.mxu0 0
    %1722 = vmatpush1.bf16.msra.mxu0 %v1355
    %1723 = vmatprep.subr.bf16.mxu0 0
    %1724 = vmatpush1.bf16.msra.mxu0 %v1356
    %1725 = vmatprep.subr.bf16.mxu0 0
    %1726 = vmatpush1.bf16.msra.mxu0 %v1357
    %1727 = vmatprep.subr.bf16.mxu0 0
    %1728 = vmatpush1.bf16.msra.mxu0 %v1358
    %1729 = vmatprep.subr.bf16.mxu0 0
    %1730 = vmatpush1.bf16.msra.mxu0 %v1359
    %1731 = vmatprep.subr.bf16.mxu0 0
    %1732 = vmatpush1.bf16.msra.mxu0 %v1360
    %1733 = vmatprep.subr.bf16.mxu0 0
    %1734 = vmatpush1.bf16.msra.mxu0 %v1361
    %1735 = vmatprep.subr.bf16.mxu0 0
    %1736 = vmatpush1.bf16.msra.mxu0 %v1362
    %1737 = vmatprep.subr.bf16.mxu0 0
    %1738 = vmatpush1.bf16.msra.mxu0 %v1363
    %1739 = vmatprep.subr.bf16.mxu0 0
    %1740 = vmatpush1.bf16.msra.mxu0 %v1364
    %1741 = vmatprep.mubr.bf16.mxu0 %v138
    %1742 = vmatmul.mubr.bf16.gmra.mrb[0].mxu0 %v137
    %v1743 = vpop.f32.mrb[0].mxu0
    %v1744 = vadd.f32 %v1704, %v1743
    %v1745 = vpop.f32.mrb[0].mxu0
    %v1746 = vpop.f32.mrb[0].mxu0
    %v1747 = vpop.f32.mrb[0].mxu0
    %1748 = vdwg.mxu0
    %1749 = vmatprep.subr.bf16.mxu0 0
    %1750 = vmatpush1.bf16.msra.mxu0 %v1365
    %1751 = vmatprep.subr.bf16.mxu0 0
    %1752 = vmatpush1.bf16.msra.mxu0 %v1366
    %1753 = vmatprep.subr.bf16.mxu0 0
    %1754 = vmatpush1.bf16.msra.mxu0 %v1367
    %1755 = vmatprep.subr.bf16.mxu0 0
    %1756 = vmatpush1.bf16.msra.mxu0 %v1368
    %1757 = vmatprep.subr.bf16.mxu0 0
    %1758 = vmatpush1.bf16.msra.mxu0 %v1369
    %1759 = vmatprep.subr.bf16.mxu0 0
    %1760 = vmatpush1.bf16.msra.mxu0 %v1370
    %1761 = vmatprep.subr.bf16.mxu0 0
    %1762 = vmatpush1.bf16.msra.mxu0 %v1371
    %1763 = vmatprep.subr.bf16.mxu0 0
    %1764 = vmatpush1.bf16.msra.mxu0 %v1372
    %1765 = vmatprep.subr.bf16.mxu0 0
    %1766 = vmatpush1.bf16.msra.mxu0 %v1373
    %1767 = vmatprep.subr.bf16.mxu0 0
    %1768 = vmatpush1.bf16.msra.mxu0 %v1374
    %1769 = vmatprep.subr.bf16.mxu0 0
    %1770 = vmatpush1.bf16.msra.mxu0 %v1375
    %1771 = vmatprep.subr.bf16.mxu0 0
    %1772 = vmatpush1.bf16.msra.mxu0 %v1376
    %1773 = vmatprep.subr.bf16.mxu0 0
    %1774 = vmatpush1.bf16.msra.mxu0 %v1377
    %1775 = vmatprep.subr.bf16.mxu0 0
    %1776 = vmatpush1.bf16.msra.mxu0 %v1378
    %1777 = vmatprep.subr.bf16.mxu0 0
    %1778 = vmatpush1.bf16.msra.mxu0 %v1379
    %1779 = vmatprep.subr.bf16.mxu0 0
    %1780 = vmatpush1.bf16.msra.mxu0 %v1380
    %1781 = vmatprep.mubr.bf16.mxu0 %v140
    %1782 = vmatmul.mubr.bf16.gmra.mrb[0].mxu0 %v139
    %v1783 = vpop.f32.mrb[0].mxu0
    %v1784 = vadd.f32 %v1744, %v1783
    %v1785 = vpop.f32.mrb[0].mxu0
    %v1786 = vpop.f32.mrb[0].mxu0
    %v1787 = vpop.f32.mrb[0].mxu0
    %1788 = vdwg.mxu0
    %1789 = vmatprep.subr.bf16.mxu0 0
    %1790 = vmatpush1.bf16.msra.mxu0 %v1381
    %1791 = vmatprep.subr.bf16.mxu0 0
    %1792 = vmatpush1.bf16.msra.mxu0 %v1382
    %1793 = vmatprep.subr.bf16.mxu0 0
    %1794 = vmatpush1.bf16.msra.mxu0 %v1383
    %1795 = vmatprep.subr.bf16.mxu0 0
    %1796 = vmatpush1.bf16.msra.mxu0 %v1384
    %1797 = vmatprep.subr.bf16.mxu0 0
    %1798 = vmatpush1.bf16.msra.mxu0 %v1385
    %1799 = vmatprep.subr.bf16.mxu0 0
    %1800 = vmatpush1.bf16.msra.mxu0 %v1386
    %1801 = vmatprep.subr.bf16.mxu0 0
    %1802 = vmatpush1.bf16.msra.mxu0 %v1387
    %1803 = vmatprep.subr.bf16.mxu0 0
    %1804 = vmatpush1.bf16.msra.mxu0 %v1388
    %1805 = vmatprep.subr.bf16.mxu0 0
    %1806 = vmatpush1.bf16.msra.mxu0 %v1389
    %1807 = vmatprep.subr.bf16.mxu0 0
    %1808 = vmatpush1.bf16.msra.mxu0 %v1390
    %1809 = vmatprep.subr.bf16.mxu0 0
    %1810 = vmatpush1.bf16.msra.mxu0 %v1391
    %1811 = vmatprep.subr.bf16.mxu0 0
    %1812 = vmatpush1.bf16.msra.mxu0 %v1392
    %1813 = vmatprep.subr.bf16.mxu0 0
    %1814 = vmatpush1.bf16.msra.mxu0 %v1393
    %1815 = vmatprep.subr.bf16.mxu0 0
    %1816 = vmatpush1.bf16.msra.mxu0 %v1394
    %1817 = vmatprep.subr.bf16.mxu0 0
    %1818 = vmatpush1.bf16.msra.mxu0 %v1395
    %1819 = vmatprep.subr.bf16.mxu0 0
    %1820 = vmatpush1.bf16.msra.mxu0 %v1396
    %1821 = vmatprep.mubr.bf16.mxu0 %v142
    %1822 = vmatmul.mubr.bf16.gmra.mrb[0].mxu0 %v141
    %v1823 = vpop.f32.mrb[0].mxu0
    %v1824 = vadd.f32 %v1784, %v1823
    %v1825 = vpop.f32.mrb[0].mxu0
    %v1826 = vpop.f32.mrb[0].mxu0
    %v1827 = vpop.f32.mrb[0].mxu0
    %1828 = vdwg.mxu0
    %1829 = vmatprep.subr.bf16.mxu0 0
    %1830 = vmatpush1.bf16.msra.mxu0 %v1397
    %1831 = vmatprep.subr.bf16.mxu0 0
    %1832 = vmatpush1.bf16.msra.mxu0 %v1398
    %1833 = vmatprep.subr.bf16.mxu0 0
    %1834 = vmatpush1.bf16.msra.mxu0 %v1399
    %1835 = vmatprep.subr.bf16.mxu0 0
    %1836 = vmatpush1.bf16.msra.mxu0 %v1400
    %1837 = vmatprep.subr.bf16.mxu0 0
    %1838 = vmatpush1.bf16.msra.mxu0 %v1401
    %1839 = vmatprep.subr.bf16.mxu0 0
    %1840 = vmatpush1.bf16.msra.mxu0 %v1402
    %1841 = vmatprep.subr.bf16.mxu0 0
    %1842 = vmatpush1.bf16.msra.mxu0 %v1403
    %1843 = vmatprep.subr.bf16.mxu0 0
    %1844 = vmatpush1.bf16.msra.mxu0 %v1404
    %1845 = vmatprep.subr.bf16.mxu0 0
    %1846 = vmatpush1.bf16.msra.mxu0 %v1405
    %1847 = vmatprep.subr.bf16.mxu0 0
    %1848 = vmatpush1.bf16.msra.mxu0 %v1406
    %1849 = vmatprep.subr.bf16.mxu0 0
    %1850 = vmatpush1.bf16.msra.mxu0 %v1407
    %1851 = vmatprep.subr.bf16.mxu0 0
    %1852 = vmatpush1.bf16.msra.mxu0 %v1408
    %1853 = vmatprep.subr.bf16.mxu0 0
    %1854 = vmatpush1.bf16.msra.mxu0 %v1409
    %1855 = vmatprep.subr.bf16.mxu0 0
    %1856 = vmatpush1.bf16.msra.mxu0 %v1410
    %1857 = vmatprep.subr.bf16.mxu0 0
    %1858 = vmatpush1.bf16.msra.mxu0 %v1411
    %1859 = vmatprep.subr.bf16.mxu0 0
    %1860 = vmatpush1.bf16.msra.mxu0 %v1412
    %1861 = vmatprep.mubr.bf16.mxu0 %v144
    %1862 = vmatmul.mubr.bf16.gmra.mrb[0].mxu0 %v143
    %v1863 = vpop.f32.mrb[0].mxu0
    %v1864 = vadd.f32 %v1824, %v1863
    %v1865 = vpop.f32.mrb[0].mxu0
    %v1866 = vpop.f32.mrb[0].mxu0
    %v1867 = vpop.f32.mrb[0].mxu0
    %1868 = vdwg.mxu0
    %1869 = vmatprep.subr.bf16.mxu0 0
    %1870 = vmatpush1.bf16.msra.mxu0 %v1413
    %1871 = vmatprep.subr.bf16.mxu0 0
    %1872 = vmatpush1.bf16.msra.mxu0 %v1414
    %1873 = vmatprep.subr.bf16.mxu0 0
    %1874 = vmatpush1.bf16.msra.mxu0 %v1415
    %1875 = vmatprep.subr.bf16.mxu0 0
    %1876 = vmatpush1.bf16.msra.mxu0 %v1416
    %1877 = vmatprep.subr.bf16.mxu0 0
    %1878 = vmatpush1.bf16.msra.mxu0 %v1417
    %1879 = vmatprep.subr.bf16.mxu0 0
    %1880 = vmatpush1.bf16.msra.mxu0 %v1418
    %1881 = vmatprep.subr.bf16.mxu0 0
    %1882 = vmatpush1.bf16.msra.mxu0 %v1419
    %1883 = vmatprep.subr.bf16.mxu0 0
    %1884 = vmatpush1.bf16.msra.mxu0 %v1420
    %1885 = vmatprep.subr.bf16.mxu0 0
    %1886 = vmatpush1.bf16.msra.mxu0 %v1421
    %1887 = vmatprep.subr.bf16.mxu0 0
    %1888 = vmatpush1.bf16.msra.mxu0 %v1422
    %1889 = vmatprep.subr.bf16.mxu0 0
    %1890 = vmatpush1.bf16.msra.mxu0 %v1423
    %1891 = vmatprep.subr.bf16.mxu0 0
    %1892 = vmatpush1.bf16.msra.mxu0 %v1424
    %1893 = vmatprep.subr.bf16.mxu0 0
    %1894 = vmatpush1.bf16.msra.mxu0 %v1425
    %1895 = vmatprep.subr.bf16.mxu0 0
    %1896 = vmatpush1.bf16.msra.mxu0 %v1426
    %1897 = vmatprep.subr.bf16.mxu0 0
    %1898 = vmatpush1.bf16.msra.mxu0 %v1427
    %1899 = vmatprep.subr.bf16.mxu0 0
    %1900 = vmatpush1.bf16.msra.mxu0 %v1428
    %1901 = vmatprep.mubr.bf16.mxu0 %v146
    %1902 = vmatmul.mubr.bf16.gmra.mrb[0].mxu0 %v145
    %v1903 = vpop.f32.mrb[0].mxu0
    %v1904 = vadd.f32 %v1864, %v1903
    %v1905 = vpop.f32.mrb[0].mxu0
    %v1906 = vpop.f32.mrb[0].mxu0
    %v1907 = vpop.f32.mrb[0].mxu0
    %1908 = vdwg.mxu0
    %1909 = vmatprep.subr.bf16.mxu0 0
    %1910 = vmatpush1.bf16.msra.mxu0 %v1429
    %1911 = vmatprep.subr.bf16.mxu0 0
    %1912 = vmatpush1.bf16.msra.mxu0 %v1430
    %1913 = vmatprep.subr.bf16.mxu0 0
    %1914 = vmatpush1.bf16.msra.mxu0 %v1431
    %1915 = vmatprep.subr.bf16.mxu0 0
    %1916 = vmatpush1.bf16.msra.mxu0 %v1432
    %1917 = vmatprep.subr.bf16.mxu0 0
    %1918 = vmatpush1.bf16.msra.mxu0 %v1433
    %1919 = vmatprep.subr.bf16.mxu0 0
    %1920 = vmatpush1.bf16.msra.mxu0 %v1434
    %1921 = vmatprep.subr.bf16.mxu0 0
    %1922 = vmatpush1.bf16.msra.mxu0 %v1435
    %1923 = vmatprep.subr.bf16.mxu0 0
    %1924 = vmatpush1.bf16.msra.mxu0 %v1436
    %1925 = vmatprep.subr.bf16.mxu0 0
    %1926 = vmatpush1.bf16.msra.mxu0 %v1437
    %1927 = vmatprep.subr.bf16.mxu0 0
    %1928 = vmatpush1.bf16.msra.mxu0 %v1438
    %1929 = vmatprep.subr.bf16.mxu0 0
    %1930 = vmatpush1.bf16.msra.mxu0 %v1439
    %1931 = vmatprep.subr.bf16.mxu0 0
    %1932 = vmatpush1.bf16.msra.mxu0 %v1440
    %1933 = vmatprep.subr.bf16.mxu0 0
    %1934 = vmatpush1.bf16.msra.mxu0 %v1441
    %1935 = vmatprep.subr.bf16.mxu0 0
    %1936 = vmatpush1.bf16.msra.mxu0 %v1442
    %1937 = vmatprep.subr.bf16.mxu0 0
    %1938 = vmatpush1.bf16.msra.mxu0 %v1443
    %1939 = vmatprep.subr.bf16.mxu0 0
    %1940 = vmatpush1.bf16.msra.mxu0 %v1444
    %1941 = vmatprep.mubr.bf16.mxu0 %v148
    %1942 = vmatmul.mubr.bf16.gmra.mrb[0].mxu0 %v147
    %v1943 = vpop.f32.mrb[0].mxu0
    %v1944 = vadd.f32 %v1904, %v1943
    %v1945 = vpop.f32.mrb[0].mxu0
    %v1946 = vpop.f32.mrb[0].mxu0
    %v1947 = vpop.f32.mrb[0].mxu0
    %1948 = vdwg.mxu0
    %1949 = vmatprep.subr.bf16.mxu0 0
    %1950 = vmatpush1.bf16.msra.mxu0 %v1301
    %1951 = vmatprep.subr.bf16.mxu0 0
    %1952 = vmatpush1.bf16.msra.mxu0 %v1302
    %1953 = vmatprep.subr.bf16.mxu0 0
    %1954 = vmatpush1.bf16.msra.mxu0 %v1303
    %1955 = vmatprep.subr.bf16.mxu0 0
    %1956 = vmatpush1.bf16.msra.mxu0 %v1304
    %1957 = vmatprep.subr.bf16.mxu0 0
    %1958 = vmatpush1.bf16.msra.mxu0 %v1305
    %1959 = vmatprep.subr.bf16.mxu0 0
    %1960 = vmatpush1.bf16.msra.mxu0 %v1306
    %1961 = vmatprep.subr.bf16.mxu0 0
    %1962 = vmatpush1.bf16.msra.mxu0 %v1307
    %1963 = vmatprep.subr.bf16.mxu0 0
    %1964 = vmatpush1.bf16.msra.mxu0 %v1308
    %1965 = vmatprep.subr.bf16.mxu0 0
    %1966 = vmatpush1.bf16.msra.mxu0 %v1309
    %1967 = vmatprep.subr.bf16.mxu0 0
    %1968 = vmatpush1.bf16.msra.mxu0 %v1310
    %1969 = vmatprep.subr.bf16.mxu0 0
    %1970 = vmatpush1.bf16.msra.mxu0 %v1311
    %1971 = vmatprep.subr.bf16.mxu0 0
    %1972 = vmatpush1.bf16.msra.mxu0 %v1312
    %1973 = vmatprep.subr.bf16.mxu0 0
    %1974 = vmatpush1.bf16.msra.mxu0 %v1313
    %1975 = vmatprep.subr.bf16.mxu0 0
    %1976 = vmatpush1.bf16.msra.mxu0 %v1314
    %1977 = vmatprep.subr.bf16.mxu0 0
    %1978 = vmatpush1.bf16.msra.mxu0 %v1315
    %1979 = vmatprep.subr.bf16.mxu0 0
    %1980 = vmatpush1.bf16.msra.mxu0 %v1316
    %1981 = vmatprep.mubr.bf16.mxu0 %v78
    %1982 = vmatmul.mubr.bf16.gmra.mrb[0].mxu0 %v77
    %v1983 = vpop.f32.mrb[0].mxu0
    %v1984 = vadd.f32 %v1944, %v1983
    %v1985 = vpop.f32.mrb[0].mxu0
    %v1986 = vpop.f32.mrb[0].mxu0
    %v1987 = vpop.f32.mrb[0].mxu0
    %1988 = vdwg.mxu0
    %1989 = vmatprep.subr.bf16.mxu0 0
    %1990 = vmatpush1.bf16.msra.mxu0 %v1317
    %1991 = vmatprep.subr.bf16.mxu0 0
    %1992 = vmatpush1.bf16.msra.mxu0 %v1318
    %1993 = vmatprep.subr.bf16.mxu0 0
    %1994 = vmatpush1.bf16.msra.mxu0 %v1319
    %1995 = vmatprep.subr.bf16.mxu0 0
    %1996 = vmatpush1.bf16.msra.mxu0 %v1320
    %1997 = vmatprep.subr.bf16.mxu0 0
    %1998 = vmatpush1.bf16.msra.mxu0 %v1321
    %1999 = vmatprep.subr.bf16.mxu0 0
    %2000 = vmatpush1.bf16.msra.mxu0 %v1322
    %2001 = vmatprep.subr.bf16.mxu0 0
    %2002 = vmatpush1.bf16.msra.mxu0 %v1323
    %2003 = vmatprep.subr.bf16.mxu0 0
    %2004 = vmatpush1.bf16.msra.mxu0 %v1324
    %2005 = vmatprep.subr.bf16.mxu0 0
    %2006 = vmatpush1.bf16.msra.mxu0 %v1325
    %2007 = vmatprep.subr.bf16.mxu0 0
    %2008 = vmatpush1.bf16.msra.mxu0 %v1326
    %2009 = vmatprep.subr.bf16.mxu0 0
    %2010 = vmatpush1.bf16.msra.mxu0 %v1327
    %2011 = vmatprep.subr.bf16.mxu0 0
    %2012 = vmatpush1.bf16.msra.mxu0 %v1328
    %2013 = vmatprep.subr.bf16.mxu0 0
    %2014 = vmatpush1.bf16.msra.mxu0 %v1329
    %2015 = vmatprep.subr.bf16.mxu0 0
    %2016 = vmatpush1.bf16.msra.mxu0 %v1330
    %2017 = vmatprep.subr.bf16.mxu0 0
    %2018 = vmatpush1.bf16.msra.mxu0 %v1331
    %2019 = vmatprep.subr.bf16.mxu0 0
    %2020 = vmatpush1.bf16.msra.mxu0 %v1332
    %2021 = vmatprep.mubr.bf16.mxu0 %v80
    %2022 = vmatmul.mubr.bf16.gmra.mrb[0].mxu0 %v79
    %v2023 = vpop.f32.mrb[0].mxu0
    %v2024 = vadd.f32 %v1984, %v2023
    %v2025 = vpop.f32.mrb[0].mxu0
    %v2026 = vpop.f32.mrb[0].mxu0
    %v2027 = vpop.f32.mrb[0].mxu0
    %2028 = vdwg.mxu0
    %2029 = vmatprep.subr.bf16.mxu0 0
    %2030 = vmatpush1.bf16.msra.mxu0 %v1333
    %2031 = vmatprep.subr.bf16.mxu0 0
    %2032 = vmatpush1.bf16.msra.mxu0 %v1334
    %2033 = vmatprep.subr.bf16.mxu0 0
    %2034 = vmatpush1.bf16.msra.mxu0 %v1335
    %2035 = vmatprep.subr.bf16.mxu0 0
    %2036 = vmatpush1.bf16.msra.mxu0 %v1336
    %2037 = vmatprep.subr.bf16.mxu0 0
    %2038 = vmatpush1.bf16.msra.mxu0 %v1337
    %2039 = vmatprep.subr.bf16.mxu0 0
    %2040 = vmatpush1.bf16.msra.mxu0 %v1338
    %2041 = vmatprep.subr.bf16.mxu0 0
    %2042 = vmatpush1.bf16.msra.mxu0 %v1339
    %2043 = vmatprep.subr.bf16.mxu0 0
    %2044 = vmatpush1.bf16.msra.mxu0 %v1340
    %2045 = vmatprep.subr.bf16.mxu0 0
    %2046 = vmatpush1.bf16.msra.mxu0 %v1341
    %2047 = vmatprep.subr.bf16.mxu0 0
    %2048 = vmatpush1.bf16.msra.mxu0 %v1342
    %2049 = vmatprep.subr.bf16.mxu0 0
    %2050 = vmatpush1.bf16.msra.mxu0 %v1343
    %2051 = vmatprep.subr.bf16.mxu0 0
    %2052 = vmatpush1.bf16.msra.mxu0 %v1344
    %2053 = vmatprep.subr.bf16.mxu0 0
    %2054 = vmatpush1.bf16.msra.mxu0 %v1345
    %2055 = vmatprep.subr.bf16.mxu0 0
    %2056 = vmatpush1.bf16.msra.mxu0 %v1346
    %2057 = vmatprep.subr.bf16.mxu0 0
    %2058 = vmatpush1.bf16.msra.mxu0 %v1347
    %2059 = vmatprep.subr.bf16.mxu0 0
    %2060 = vmatpush1.bf16.msra.mxu0 %v1348
    %2061 = vmatprep.mubr.bf16.mxu0 %v82
    %2062 = vmatmul.mubr.bf16.gmra.mrb[0].mxu0 %v81
    %v2063 = vpop.f32.mrb[0].mxu0
    %v2064 = vadd.f32 %v2024, %v2063
    %v2065 = vpop.f32.mrb[0].mxu0
    %v2066 = vpop.f32.mrb[0].mxu0
    %v2067 = vpop.f32.mrb[0].mxu0
    %2068 = vdwg.mxu0
    %2069 = vmatprep.subr.bf16.mxu0 0
    %2070 = vmatpush1.bf16.msra.mxu0 %v1349
    %2071 = vmatprep.subr.bf16.mxu0 0
    %2072 = vmatpush1.bf16.msra.mxu0 %v1350
    %2073 = vmatprep.subr.bf16.mxu0 0
    %2074 = vmatpush1.bf16.msra.mxu0 %v1351
    %2075 = vmatprep.subr.bf16.mxu0 0
    %2076 = vmatpush1.bf16.msra.mxu0 %v1352
    %2077 = vmatprep.subr.bf16.mxu0 0
    %2078 = vmatpush1.bf16.msra.mxu0 %v1353
    %2079 = vmatprep.subr.bf16.mxu0 0
    %2080 = vmatpush1.bf16.msra.mxu0 %v1354
    %2081 = vmatprep.subr.bf16.mxu0 0
    %2082 = vmatpush1.bf16.msra.mxu0 %v1355
    %2083 = vmatprep.subr.bf16.mxu0 0
    %2084 = vmatpush1.bf16.msra.mxu0 %v1356
    %2085 = vmatprep.subr.bf16.mxu0 0
    %2086 = vmatpush1.bf16.msra.mxu0 %v1357
    %2087 = vmatprep.subr.bf16.mxu0 0
    %2088 = vmatpush1.bf16.msra.mxu0 %v1358
    %2089 = vmatprep.subr.bf16.mxu0 0
    %2090 = vmatpush1.bf16.msra.mxu0 %v1359
    %2091 = vmatprep.subr.bf16.mxu0 0
    %2092 = vmatpush1.bf16.msra.mxu0 %v1360
    %2093 = vmatprep.subr.bf16.mxu0 0
    %2094 = vmatpush1.bf16.msra.mxu0 %v1361
    %2095 = vmatprep.subr.bf16.mxu0 0
    %2096 = vmatpush1.bf16.msra.mxu0 %v1362
    %2097 = vmatprep.subr.bf16.mxu0 0
    %2098 = vmatpush1.bf16.msra.mxu0 %v1363
    %2099 = vmatprep.subr.bf16.mxu0 0
    %2100 = vmatpush1.bf16.msra.mxu0 %v1364
    %2101 = vmatprep.mubr.bf16.mxu0 %v84
    %2102 = vmatmul.mubr.bf16.gmra.mrb[0].mxu0 %v83
    %v2103 = vpop.f32.mrb[0].mxu0
    %v2104 = vadd.f32 %v2064, %v2103
    %v2105 = vpop.f32.mrb[0].mxu0
    %v2106 = vpop.f32.mrb[0].mxu0
    %v2107 = vpop.f32.mrb[0].mxu0
    %2108 = vdwg.mxu0
    %2109 = vmatprep.subr.bf16.mxu0 0
    %2110 = vmatpush1.bf16.msra.mxu0 %v1365
    %2111 = vmatprep.subr.bf16.mxu0 0
    %2112 = vmatpush1.bf16.msra.mxu0 %v1366
    %2113 = vmatprep.subr.bf16.mxu0 0
    %2114 = vmatpush1.bf16.msra.mxu0 %v1367
    %2115 = vmatprep.subr.bf16.mxu0 0
    %2116 = vmatpush1.bf16.msra.mxu0 %v1368
    %2117 = vmatprep.subr.bf16.mxu0 0
    %2118 = vmatpush1.bf16.msra.mxu0 %v1369
    %2119 = vmatprep.subr.bf16.mxu0 0
    %2120 = vmatpush1.bf16.msra.mxu0 %v1370
    %2121 = vmatprep.subr.bf16.mxu0 0
    %2122 = vmatpush1.bf16.msra.mxu0 %v1371
    %2123 = vmatprep.subr.bf16.mxu0 0
    %2124 = vmatpush1.bf16.msra.mxu0 %v1372
    %2125 = vmatprep.subr.bf16.mxu0 0
    %2126 = vmatpush1.bf16.msra.mxu0 %v1373
    %2127 = vmatprep.subr.bf16.mxu0 0
    %2128 = vmatpush1.bf16.msra.mxu0 %v1374
    %2129 = vmatprep.subr.bf16.mxu0 0
    %2130 = vmatpush1.bf16.msra.mxu0 %v1375
    %2131 = vmatprep.subr.bf16.mxu0 0
    %2132 = vmatpush1.bf16.msra.mxu0 %v1376
    %2133 = vmatprep.subr.bf16.mxu0 0
    %2134 = vmatpush1.bf16.msra.mxu0 %v1377
    %2135 = vmatprep.subr.bf16.mxu0 0
    %2136 = vmatpush1.bf16.msra.mxu0 %v1378
    %2137 = vmatprep.subr.bf16.mxu0 0
    %2138 = vmatpush1.bf16.msra.mxu0 %v1379
    %2139 = vmatprep.subr.bf16.mxu0 0
    %2140 = vmatpush1.bf16.msra.mxu0 %v1380
    %2141 = vmatprep.mubr.bf16.mxu0 %v86
    %2142 = vmatmul.mubr.bf16.gmra.mrb[0].mxu0 %v85
    %v2143 = vpop.f32.mrb[0].mxu0
    %v2144 = vadd.f32 %v2104, %v2143
    %v2145 = vpop.f32.mrb[0].mxu0
    %v2146 = vpop.f32.mrb[0].mxu0
    %v2147 = vpop.f32.mrb[0].mxu0
    %2148 = vdwg.mxu0
    %2149 = vmatprep.subr.bf16.mxu0 0
    %2150 = vmatpush1.bf16.msra.mxu0 %v1381
    %2151 = vmatprep.subr.bf16.mxu0 0
    %2152 = vmatpush1.bf16.msra.mxu0 %v1382
    %2153 = vmatprep.subr.bf16.mxu0 0
    %2154 = vmatpush1.bf16.msra.mxu0 %v1383
    %2155 = vmatprep.subr.bf16.mxu0 0
    %2156 = vmatpush1.bf16.msra.mxu0 %v1384
    %2157 = vmatprep.subr.bf16.mxu0 0
    %2158 = vmatpush1.bf16.msra.mxu0 %v1385
    %2159 = vmatprep.subr.bf16.mxu0 0
    %2160 = vmatpush1.bf16.msra.mxu0 %v1386
    %2161 = vmatprep.subr.bf16.mxu0 0
    %2162 = vmatpush1.bf16.msra.mxu0 %v1387
    %2163 = vmatprep.subr.bf16.mxu0 0
    %2164 = vmatpush1.bf16.msra.mxu0 %v1388
    %2165 = vmatprep.subr.bf16.mxu0 0
    %2166 = vmatpush1.bf16.msra.mxu0 %v1389
    %2167 = vmatprep.subr.bf16.mxu0 0
    %2168 = vmatpush1.bf16.msra.mxu0 %v1390
    %2169 = vmatprep.subr.bf16.mxu0 0
    %2170 = vmatpush1.bf16.msra.mxu0 %v1391
    %2171 = vmatprep.subr.bf16.mxu0 0
    %2172 = vmatpush1.bf16.msra.mxu0 %v1392
    %2173 = vmatprep.subr.bf16.mxu0 0
    %2174 = vmatpush1.bf16.msra.mxu0 %v1393
    %2175 = vmatprep.subr.bf16.mxu0 0
    %2176 = vmatpush1.bf16.msra.mxu0 %v1394
    %2177 = vmatprep.subr.bf16.mxu0 0
    %2178 = vmatpush1.bf16.msra.mxu0 %v1395
    %2179 = vmatprep.subr.bf16.mxu0 0
    %2180 = vmatpush1.bf16.msra.mxu0 %v1396
    %2181 = vmatprep.mubr.bf16.mxu0 %v88
    %2182 = vmatmul.mubr.bf16.gmra.mrb[0].mxu0 %v87
    %v2183 = vpop.f32.mrb[0].mxu0
    %v2184 = vadd.f32 %v2144, %v2183
    %v2185 = vpop.f32.mrb[0].mxu0
    %v2186 = vpop.f32.mrb[0].mxu0
    %v2187 = vpop.f32.mrb[0].mxu0
    %2188 = vdwg.mxu0
    %2189 = vmatprep.subr.bf16.mxu0 0
    %2190 = vmatpush1.bf16.msra.mxu0 %v1397
    %2191 = vmatprep.subr.bf16.mxu0 0
    %2192 = vmatpush1.bf16.msra.mxu0 %v1398
    %2193 = vmatprep.subr.bf16.mxu0 0
    %2194 = vmatpush1.bf16.msra.mxu0 %v1399
    %2195 = vmatprep.subr.bf16.mxu0 0
    %2196 = vmatpush1.bf16.msra.mxu0 %v1400
    %2197 = vmatprep.subr.bf16.mxu0 0
    %2198 = vmatpush1.bf16.msra.mxu0 %v1401
    %2199 = vmatprep.subr.bf16.mxu0 0
    %2200 = vmatpush1.bf16.msra.mxu0 %v1402
    %2201 = vmatprep.subr.bf16.mxu0 0
    %2202 = vmatpush1.bf16.msra.mxu0 %v1403
    %2203 = vmatprep.subr.bf16.mxu0 0
    %2204 = vmatpush1.bf16.msra.mxu0 %v1404
    %2205 = vmatprep.subr.bf16.mxu0 0
    %2206 = vmatpush1.bf16.msra.mxu0 %v1405
    %2207 = vmatprep.subr.bf16.mxu0 0
    %2208 = vmatpush1.bf16.msra.mxu0 %v1406
    %2209 = vmatprep.subr.bf16.mxu0 0
    %2210 = vmatpush1.bf16.msra.mxu0 %v1407
    %2211 = vmatprep.subr.bf16.mxu0 0
    %2212 = vmatpush1.bf16.msra.mxu0 %v1408
    %2213 = vmatprep.subr.bf16.mxu0 0
    %2214 = vmatpush1.bf16.msra.mxu0 %v1409
    %2215 = vmatprep.subr.bf16.mxu0 0
    %2216 = vmatpush1.bf16.msra.mxu0 %v1410
    %2217 = vmatprep.subr.bf16.mxu0 0
    %2218 = vmatpush1.bf16.msra.mxu0 %v1411
    %2219 = vmatprep.subr.bf16.mxu0 0
    %2220 = vmatpush1.bf16.msra.mxu0 %v1412
    %2221 = vmatprep.mubr.bf16.mxu0 %v90
    %2222 = vmatmul.mubr.bf16.gmra.mrb[0].mxu0 %v89
    %v2223 = vpop.f32.mrb[0].mxu0
    %v2224 = vadd.f32 %v2184, %v2223
    %v2225 = vpop.f32.mrb[0].mxu0
    %v2226 = vpop.f32.mrb[0].mxu0
    %v2227 = vpop.f32.mrb[0].mxu0
    %2228 = vdwg.mxu0
    %2229 = vmatprep.subr.bf16.mxu0 0
    %2230 = vmatpush1.bf16.msra.mxu0 %v1413
    %2231 = vmatprep.subr.bf16.mxu0 0
    %2232 = vmatpush1.bf16.msra.mxu0 %v1414
    %2233 = vmatprep.subr.bf16.mxu0 0
    %2234 = vmatpush1.bf16.msra.mxu0 %v1415
    %2235 = vmatprep.subr.bf16.mxu0 0
    %2236 = vmatpush1.bf16.msra.mxu0 %v1416
    %2237 = vmatprep.subr.bf16.mxu0 0
    %2238 = vmatpush1.bf16.msra.mxu0 %v1417
    %2239 = vmatprep.subr.bf16.mxu0 0
    %2240 = vmatpush1.bf16.msra.mxu0 %v1418
    %2241 = vmatprep.subr.bf16.mxu0 0
    %2242 = vmatpush1.bf16.msra.mxu0 %v1419
    %2243 = vmatprep.subr.bf16.mxu0 0
    %2244 = vmatpush1.bf16.msra.mxu0 %v1420
    %2245 = vmatprep.subr.bf16.mxu0 0
    %2246 = vmatpush1.bf16.msra.mxu0 %v1421
    %2247 = vmatprep.subr.bf16.mxu0 0
    %2248 = vmatpush1.bf16.msra.mxu0 %v1422
    %2249 = vmatprep.subr.bf16.mxu0 0
    %2250 = vmatpush1.bf16.msra.mxu0 %v1423
    %2251 = vmatprep.subr.bf16.mxu0 0
    %2252 = vmatpush1.bf16.msra.mxu0 %v1424
    %2253 = vmatprep.subr.bf16.mxu0 0
    %2254 = vmatpush1.bf16.msra.mxu0 %v1425
    %2255 = vmatprep.subr.bf16.mxu0 0
    %2256 = vmatpush1.bf16.msra.mxu0 %v1426
    %2257 = vmatprep.subr.bf16.mxu0 0
    %2258 = vmatpush1.bf16.msra.mxu0 %v1427
    %2259 = vmatprep.subr.bf16.mxu0 0
    %2260 = vmatpush1.bf16.msra.mxu0 %v1428
    %2261 = vmatprep.mubr.bf16.mxu0 %v92
    %2262 = vmatmul.mubr.bf16.gmra.mrb[0].mxu0 %v91
    %v2263 = vpop.f32.mrb[0].mxu0
    %v2264 = vadd.f32 %v2224, %v2263
    %v2265 = vpop.f32.mrb[0].mxu0
    %v2266 = vpop.f32.mrb[0].mxu0
    %v2267 = vpop.f32.mrb[0].mxu0
    %2268 = vdwg.mxu0
    %2269 = vmatprep.subr.bf16.mxu0 0
    %2270 = vmatpush1.bf16.msra.mxu0 %v1429
    %2271 = vmatprep.subr.bf16.mxu0 0
    %2272 = vmatpush1.bf16.msra.mxu0 %v1430
    %2273 = vmatprep.subr.bf16.mxu0 0
    %2274 = vmatpush1.bf16.msra.mxu0 %v1431
    %2275 = vmatprep.subr.bf16.mxu0 0
    %2276 = vmatpush1.bf16.msra.mxu0 %v1432
    %2277 = vmatprep.subr.bf16.mxu0 0
    %2278 = vmatpush1.bf16.msra.mxu0 %v1433
    %2279 = vmatprep.subr.bf16.mxu0 0
    %2280 = vmatpush1.bf16.msra.mxu0 %v1434
    %2281 = vmatprep.subr.bf16.mxu0 0
    %2282 = vmatpush1.bf16.msra.mxu0 %v1435
    %2283 = vmatprep.subr.bf16.mxu0 0
    %2284 = vmatpush1.bf16.msra.mxu0 %v1436
    %2285 = vmatprep.subr.bf16.mxu0 0
    %2286 = vmatpush1.bf16.msra.mxu0 %v1437
    %2287 = vmatprep.subr.bf16.mxu0 0
    %2288 = vmatpush1.bf16.msra.mxu0 %v1438
    %2289 = vmatprep.subr.bf16.mxu0 0
    %2290 = vmatpush1.bf16.msra.mxu0 %v1439
    %2291 = vmatprep.subr.bf16.mxu0 0
    %2292 = vmatpush1.bf16.msra.mxu0 %v1440
    %2293 = vmatprep.subr.bf16.mxu0 0
    %2294 = vmatpush1.bf16.msra.mxu0 %v1441
    %2295 = vmatprep.subr.bf16.mxu0 0
    %2296 = vmatpush1.bf16.msra.mxu0 %v1442
    %2297 = vmatprep.subr.bf16.mxu0 0
    %2298 = vmatpush1.bf16.msra.mxu0 %v1443
    %2299 = vmatprep.subr.bf16.mxu0 0
    %2300 = vmatpush1.bf16.msra.mxu0 %v1444
    %2301 = vmatprep.mubr.bf16.mxu0 %v94
    %2302 = vmatmul.mubr.bf16.gmra.mrb[0].mxu0 %v93
    %v2303 = vpop.f32.mrb[0].mxu0
    %v2304 = vadd.f32 %v2264, %v2303
    %v2305 = vpop.f32.mrb[0].mxu0
    %v2306 = vpop.f32.mrb[0].mxu0
    %v2307 = vpop.f32.mrb[0].mxu0
    %2308 = vdwg.mxu0
    %v2597 = vunpack.c.l.b16 %v437
    %v2598 = vunpack.c.l.b16 %v438
    %v2599 = vunpack.c.l.b16 %v439
    %v2600 = vunpack.c.l.b16 %v440
    %v2601 = vunpack.c.l.b16 %v441
    %v2602 = vunpack.c.l.b16 %v442
    %v2603 = vunpack.c.l.b16 %v443
    %v2604 = vunpack.c.l.b16 %v444
    %v2605 = vunpack.c.l.b16 %v445
    %v2606 = vunpack.c.l.b16 %v446
    %v2607 = vunpack.c.l.b16 %v447
    %v2608 = vunpack.c.l.b16 %v448
    %v2609 = vunpack.c.l.b16 %v449
    %v2610 = vunpack.c.l.b16 %v450
    %v2611 = vunpack.c.l.b16 %v451
    %v2612 = vunpack.c.l.b16 %v452
    %v2613 = vunpack.c.l.b16 %v453
    %v2614 = vunpack.c.l.b16 %v454
    %v2615 = vunpack.c.l.b16 %v455
    %v2616 = vunpack.c.l.b16 %v456
    %v2617 = vunpack.c.l.b16 %v457
    %v2618 = vunpack.c.l.b16 %v458
    %v2619 = vunpack.c.l.b16 %v459
    %v2620 = vunpack.c.l.b16 %v460
    %v2621 = vunpack.c.l.b16 %v461
    %v2622 = vunpack.c.l.b16 %v462
    %v2623 = vunpack.c.l.b16 %v463
    %v2624 = vunpack.c.l.b16 %v464
    %v2625 = vunpack.c.l.b16 %v465
    %v2626 = vunpack.c.l.b16 %v466
    %v2627 = vunpack.c.l.b16 %v467
    %v2628 = vunpack.c.l.b16 %v468
    %v2629 = vunpack.c.l.b16 %v469
    %v2630 = vunpack.c.l.b16 %v470
    %v2631 = vunpack.c.l.b16 %v471
    %v2632 = vunpack.c.l.b16 %v472
    %v2633 = vunpack.c.l.b16 %v473
    %v2634 = vunpack.c.l.b16 %v474
    %v2635 = vunpack.c.l.b16 %v475
    %v2636 = vunpack.c.l.b16 %v476
    %v2637 = vunpack.c.l.b16 %v477
    %v2638 = vunpack.c.l.b16 %v478
    %v2639 = vunpack.c.l.b16 %v479
    %v2640 = vunpack.c.l.b16 %v480
    %v2641 = vunpack.c.l.b16 %v481
    %v2642 = vunpack.c.l.b16 %v482
    %v2643 = vunpack.c.l.b16 %v483
    %v2644 = vunpack.c.l.b16 %v484
    %v2645 = vunpack.c.l.b16 %v485
    %v2646 = vunpack.c.l.b16 %v486
    %v2647 = vunpack.c.l.b16 %v487
    %v2648 = vunpack.c.l.b16 %v488
    %v2649 = vunpack.c.l.b16 %v489
    %v2650 = vunpack.c.l.b16 %v490
    %v2651 = vunpack.c.l.b16 %v491
    %v2652 = vunpack.c.l.b16 %v492
    %v2653 = vunpack.c.l.b16 %v493
    %v2654 = vunpack.c.l.b16 %v494
    %v2655 = vunpack.c.l.b16 %v495
    %v2656 = vunpack.c.l.b16 %v496
    %v2657 = vunpack.c.l.b16 %v497
    %v2658 = vunpack.c.l.b16 %v498
    %v2659 = vunpack.c.l.b16 %v499
    %v2660 = vunpack.c.l.b16 %v500
    %v2661 = vunpack.c.l.b16 %v501
    %v2662 = vunpack.c.l.b16 %v502
    %v2663 = vunpack.c.l.b16 %v503
    %v2664 = vunpack.c.l.b16 %v504
    %v2665 = vunpack.c.l.b16 %v505
    %v2666 = vunpack.c.l.b16 %v506
    %v2667 = vunpack.c.l.b16 %v507
    %v2668 = vunpack.c.l.b16 %v508
    %v2669 = vunpack.c.l.b16 %v509
    %v2670 = vunpack.c.l.b16 %v510
    %v2671 = vunpack.c.l.b16 %v511
    %v2672 = vunpack.c.l.b16 %v512
    %v2673 = vunpack.c.l.b16 %v513
    %v2674 = vunpack.c.l.b16 %v514
    %v2675 = vunpack.c.l.b16 %v515
    %v2676 = vunpack.c.l.b16 %v516
    %v2677 = vunpack.c.l.b16 %v517
    %v2678 = vunpack.c.l.b16 %v518
    %v2679 = vunpack.c.l.b16 %v519
    %v2680 = vunpack.c.l.b16 %v520
    %v2681 = vunpack.c.l.b16 %v521
    %v2682 = vunpack.c.l.b16 %v522
    %v2683 = vunpack.c.l.b16 %v523
    %v2684 = vunpack.c.l.b16 %v524
    %v2685 = vunpack.c.l.b16 %v525
    %v2686 = vunpack.c.l.b16 %v526
    %v2687 = vunpack.c.l.b16 %v527
    %v2688 = vunpack.c.l.b16 %v528
    %v2689 = vunpack.c.l.b16 %v529
    %v2690 = vunpack.c.l.b16 %v530
    %v2691 = vunpack.c.l.b16 %v531
    %v2692 = vunpack.c.l.b16 %v532
    %v2693 = vunpack.c.l.b16 %v533
    %v2694 = vunpack.c.l.b16 %v534
    %v2695 = vunpack.c.l.b16 %v535
    %v2696 = vunpack.c.l.b16 %v536
    %v2697 = vunpack.c.l.b16 %v537
    %v2698 = vunpack.c.l.b16 %v538
    %v2699 = vunpack.c.l.b16 %v539
    %v2700 = vunpack.c.l.b16 %v540
    %v2701 = vunpack.c.l.b16 %v541
    %v2702 = vunpack.c.l.b16 %v542
    %v2703 = vunpack.c.l.b16 %v543
    %v2704 = vunpack.c.l.b16 %v544
    %v2705 = vunpack.c.l.b16 %v545
    %v2706 = vunpack.c.l.b16 %v546
    %v2707 = vunpack.c.l.b16 %v547
    %v2708 = vunpack.c.l.b16 %v548
    %v2709 = vunpack.c.l.b16 %v549
    %v2710 = vunpack.c.l.b16 %v550
    %v2711 = vunpack.c.l.b16 %v551
    %v2712 = vunpack.c.l.b16 %v552
    %v2713 = vunpack.c.l.b16 %v553
    %v2714 = vunpack.c.l.b16 %v554
    %v2715 = vunpack.c.l.b16 %v555
    %v2716 = vunpack.c.l.b16 %v556
    %v2717 = vunpack.c.l.b16 %v557
    %v2718 = vunpack.c.l.b16 %v558
    %v2719 = vunpack.c.l.b16 %v559
    %v2720 = vunpack.c.l.b16 %v560
    %v2721 = vunpack.c.l.b16 %v561
    %v2722 = vunpack.c.l.b16 %v562
    %v2723 = vunpack.c.l.b16 %v563
    %v2724 = vunpack.c.l.b16 %v564
    %v2725 = vunpack.c.l.b16 %v565
    %v2726 = vunpack.c.l.b16 %v566
    %v2727 = vunpack.c.l.b16 %v567
    %v2728 = vunpack.c.l.b16 %v568
    %v2729 = vunpack.c.l.b16 %v569
    %v2730 = vunpack.c.l.b16 %v570
    %v2731 = vunpack.c.l.b16 %v571
    %v2732 = vunpack.c.l.b16 %v572
    %v2733 = vunpack.c.l.b16 %v573
    %v2734 = vunpack.c.l.b16 %v574
    %v2735 = vunpack.c.l.b16 %v575
    %v2736 = vunpack.c.l.b16 %v576
    %v2737 = vunpack.c.l.b16 %v577
    %v2738 = vunpack.c.l.b16 %v578
    %v2739 = vunpack.c.l.b16 %v579
    %v2740 = vunpack.c.l.b16 %v580
    %v2741 = vunpack.c.l.b16 %v581
    %v2742 = vunpack.c.l.b16 %v582
    %v2743 = vunpack.c.l.b16 %v583
    %v2744 = vunpack.c.l.b16 %v584
    %v2745 = vunpack.c.l.b16 %v585
    %v2746 = vunpack.c.l.b16 %v586
    %v2747 = vunpack.c.l.b16 %v587
    %v2748 = vunpack.c.l.b16 %v588
    %v2749 = vunpack.c.l.b16 %v589
    %v2750 = vunpack.c.l.b16 %v590
    %v2751 = vunpack.c.l.b16 %v591
    %v2752 = vunpack.c.l.b16 %v592
    %v2753 = vunpack.c.l.b16 %v593
    %v2754 = vunpack.c.l.b16 %v594
    %v2755 = vunpack.c.l.b16 %v595
    %v2756 = vunpack.c.l.b16 %v596
    %v2757 = vunpack.c.l.b16 %v597
    %v2758 = vunpack.c.l.b16 %v598
    %v2759 = vunpack.c.l.b16 %v599
    %v2760 = vunpack.c.l.b16 %v600
    %v2761 = vunpack.c.l.b16 %v601
    %v2762 = vunpack.c.l.b16 %v602
    %v2763 = vunpack.c.l.b16 %v603
    %v2764 = vunpack.c.l.b16 %v604
    %v2765 = vunpack.c.l.b16 %v605
    %v2766 = vunpack.c.l.b16 %v606
    %v2767 = vunpack.c.l.b16 %v607
    %v2768 = vunpack.c.l.b16 %v608
    %v2769 = vunpack.c.l.b16 %v609
    %v2770 = vunpack.c.l.b16 %v610
    %v2771 = vunpack.c.l.b16 %v611
    %v2772 = vunpack.c.l.b16 %v612
    %v2773 = vunpack.c.l.b16 %v613
    %v2774 = vunpack.c.l.b16 %v614
    %v2775 = vunpack.c.l.b16 %v615
    %v2776 = vunpack.c.l.b16 %v616
    %v2777 = vunpack.c.l.b16 %v617
    %v2778 = vunpack.c.l.b16 %v618
    %v2779 = vunpack.c.l.b16 %v619
    %v2780 = vunpack.c.l.b16 %v620
    %v2781 = vunpack.c.l.b16 %v621
    %v2782 = vunpack.c.l.b16 %v622
    %v2783 = vunpack.c.l.b16 %v623
    %v2784 = vunpack.c.l.b16 %v624
    %v2785 = vunpack.c.l.b16 %v625
    %v2786 = vunpack.c.l.b16 %v626
    %v2787 = vunpack.c.l.b16 %v627
    %v2788 = vunpack.c.l.b16 %v628
    %v2789 = vunpack.c.l.b16 %v629
    %v2790 = vunpack.c.l.b16 %v630
    %v2791 = vunpack.c.l.b16 %v631
    %v2792 = vunpack.c.l.b16 %v632
    %v2793 = vunpack.c.l.b16 %v633
    %v2794 = vunpack.c.l.b16 %v634
    %v2795 = vunpack.c.l.b16 %v635
    %v2796 = vunpack.c.l.b16 %v636
    %v2797 = vunpack.c.l.b16 %v637
    %v2798 = vunpack.c.l.b16 %v638
    %v2799 = vunpack.c.l.b16 %v639
    %v2800 = vunpack.c.l.b16 %v640
    %v2801 = vunpack.c.l.b16 %v641
    %v2802 = vunpack.c.l.b16 %v642
    %v2803 = vunpack.c.l.b16 %v643
    %v2804 = vunpack.c.l.b16 %v644
    %v2805 = vunpack.c.l.b16 %v645
    %v2806 = vunpack.c.l.b16 %v646
    %v2807 = vunpack.c.l.b16 %v647
    %v2808 = vunpack.c.l.b16 %v648
    %v2809 = vunpack.c.l.b16 %v649
    %v2810 = vunpack.c.l.b16 %v650
    %v2811 = vunpack.c.l.b16 %v651
    %v2812 = vunpack.c.l.b16 %v652
    %v2813 = vunpack.c.l.b16 %v653
    %v2814 = vunpack.c.l.b16 %v654
    %v2815 = vunpack.c.l.b16 %v655
    %v2816 = vunpack.c.l.b16 %v656
    %v2817 = vunpack.c.l.b16 %v657
    %v2818 = vunpack.c.l.b16 %v658
    %v2819 = vunpack.c.l.b16 %v659
    %v2820 = vunpack.c.l.b16 %v660
    %v2821 = vunpack.c.l.b16 %v661
    %v2822 = vunpack.c.l.b16 %v662
    %v2823 = vunpack.c.l.b16 %v663
    %v2824 = vunpack.c.l.b16 %v664
    %v2825 = vunpack.c.l.b16 %v665
    %v2826 = vunpack.c.l.b16 %v666
    %v2827 = vunpack.c.l.b16 %v667
    %v2828 = vunpack.c.l.b16 %v668
    %v2829 = vunpack.c.l.b16 %v669
    %v2830 = vunpack.c.l.b16 %v670
    %v2831 = vunpack.c.l.b16 %v671
    %v2832 = vunpack.c.l.b16 %v672
    %v2833 = vunpack.c.l.b16 %v673
    %v2834 = vunpack.c.l.b16 %v674
    %v2835 = vunpack.c.l.b16 %v675
    %v2836 = vunpack.c.l.b16 %v676
    %v2837 = vunpack.c.l.b16 %v677
    %v2838 = vunpack.c.l.b16 %v678
    %v2839 = vunpack.c.l.b16 %v679
    %v2840 = vunpack.c.l.b16 %v680
    %v2841 = vunpack.c.l.b16 %v681
    %v2842 = vunpack.c.l.b16 %v682
    %v2843 = vunpack.c.l.b16 %v683
    %v2844 = vunpack.c.l.b16 %v684
    %v2845 = vunpack.c.l.b16 %v685
    %v2846 = vunpack.c.l.b16 %v686
    %v2847 = vunpack.c.l.b16 %v687
    %v2848 = vunpack.c.l.b16 %v688
    %v2849 = vunpack.c.l.b16 %v689
    %v2850 = vunpack.c.l.b16 %v690
    %v2851 = vunpack.c.l.b16 %v691
    %v2852 = vunpack.c.l.b16 %v692
    %v2853 = vunpack.c.l.b16 %v693
    %v2854 = vunpack.c.l.b16 %v694
    %v2855 = vunpack.c.l.b16 %v695
    %v2856 = vunpack.c.l.b16 %v696
    %v2857 = vunpack.c.l.b16 %v697
    %v2858 = vunpack.c.l.b16 %v698
    %v2859 = vunpack.c.l.b16 %v699
    %v2860 = vunpack.c.l.b16 %v700
    %v2861 = vunpack.c.l.b16 %v701
    %v2862 = vunpack.c.l.b16 %v702
    %v2863 = vunpack.c.l.b16 %v703
    %v2864 = vunpack.c.l.b16 %v704
    %v2865 = vunpack.c.l.b16 %v705
    %v2866 = vunpack.c.l.b16 %v706
    %v2867 = vunpack.c.l.b16 %v707
    %v2868 = vunpack.c.l.b16 %v708
    %v2869 = vunpack.c.l.b16 %v709
    %v2870 = vunpack.c.l.b16 %v710
    %v2871 = vunpack.c.l.b16 %v711
    %v2872 = vunpack.c.l.b16 %v712
    %v2873 = vunpack.c.l.b16 %v713
    %v2874 = vunpack.c.l.b16 %v714
    %v2875 = vunpack.c.l.b16 %v715
    %v2876 = vunpack.c.l.b16 %v716
    %v2877 = vunpack.c.l.b16 %v717
    %v2878 = vunpack.c.l.b16 %v718
    %v2879 = vunpack.c.l.b16 %v719
    %v2880 = vunpack.c.l.b16 %v720
    %v2881 = vunpack.c.l.b16 %v721
    %v2882 = vunpack.c.l.b16 %v722
    %v2883 = vunpack.c.l.b16 %v723
    %v2884 = vunpack.c.l.b16 %v724
    %v2885 = vpack.c.b16 %v2598, %v2597
    %v2886 = vpack.c.b16 %v2600, %v2599
    %v2887 = vpack.c.b16 %v2602, %v2601
    %v2888 = vpack.c.b16 %v2604, %v2603
    %v2889 = vpack.c.b16 %v2606, %v2605
    %v2890 = vpack.c.b16 %v2608, %v2607
    %v2891 = vpack.c.b16 %v2610, %v2609
    %v2892 = vpack.c.b16 %v2612, %v2611
    %v2893 = vpack.c.b16 %v2614, %v2613
    %v2894 = vpack.c.b16 %v2616, %v2615
    %v2895 = vpack.c.b16 %v2618, %v2617
    %v2896 = vpack.c.b16 %v2620, %v2619
    %v2897 = vpack.c.b16 %v2622, %v2621
    %v2898 = vpack.c.b16 %v2624, %v2623
    %v2899 = vpack.c.b16 %v2626, %v2625
    %v2900 = vpack.c.b16 %v2628, %v2627
    %v2901 = vpack.c.b16 %v2630, %v2629
    %v2902 = vpack.c.b16 %v2632, %v2631
    %v2903 = vpack.c.b16 %v2634, %v2633
    %v2904 = vpack.c.b16 %v2636, %v2635
    %v2905 = vpack.c.b16 %v2638, %v2637
    %v2906 = vpack.c.b16 %v2640, %v2639
    %v2907 = vpack.c.b16 %v2642, %v2641
    %v2908 = vpack.c.b16 %v2644, %v2643
    %v2909 = vpack.c.b16 %v2646, %v2645
    %v2910 = vpack.c.b16 %v2648, %v2647
    %v2911 = vpack.c.b16 %v2650, %v2649
    %v2912 = vpack.c.b16 %v2652, %v2651
    %v2913 = vpack.c.b16 %v2654, %v2653
    %v2914 = vpack.c.b16 %v2656, %v2655
    %v2915 = vpack.c.b16 %v2658, %v2657
    %v2916 = vpack.c.b16 %v2660, %v2659
    %v2917 = vpack.c.b16 %v2662, %v2661
    %v2918 = vpack.c.b16 %v2664, %v2663
    %v2919 = vpack.c.b16 %v2666, %v2665
    %v2920 = vpack.c.b16 %v2668, %v2667
    %v2921 = vpack.c.b16 %v2670, %v2669
    %v2922 = vpack.c.b16 %v2672, %v2671
    %v2923 = vpack.c.b16 %v2674, %v2673
    %v2924 = vpack.c.b16 %v2676, %v2675
    %v2925 = vpack.c.b16 %v2678, %v2677
    %v2926 = vpack.c.b16 %v2680, %v2679
    %v2927 = vpack.c.b16 %v2682, %v2681
    %v2928 = vpack.c.b16 %v2684, %v2683
    %v2929 = vpack.c.b16 %v2686, %v2685
    %v2930 = vpack.c.b16 %v2688, %v2687
    %v2931 = vpack.c.b16 %v2690, %v2689
    %v2932 = vpack.c.b16 %v2692, %v2691
    %v2933 = vpack.c.b16 %v2694, %v2693
    %v2934 = vpack.c.b16 %v2696, %v2695
    %v2935 = vpack.c.b16 %v2698, %v2697
    %v2936 = vpack.c.b16 %v2700, %v2699
    %v2937 = vpack.c.b16 %v2702, %v2701
    %v2938 = vpack.c.b16 %v2704, %v2703
    %v2939 = vpack.c.b16 %v2706, %v2705
    %v2940 = vpack.c.b16 %v2708, %v2707
    %v2941 = vpack.c.b16 %v2710, %v2709
    %v2942 = vpack.c.b16 %v2712, %v2711
    %v2943 = vpack.c.b16 %v2714, %v2713
    %v2944 = vpack.c.b16 %v2716, %v2715
    %v2945 = vpack.c.b16 %v2718, %v2717
    %v2946 = vpack.c.b16 %v2720, %v2719
    %v2947 = vpack.c.b16 %v2722, %v2721
    %v2948 = vpack.c.b16 %v2724, %v2723
    %v2949 = vpack.c.b16 %v2726, %v2725
    %v2950 = vpack.c.b16 %v2728, %v2727
    %v2951 = vpack.c.b16 %v2730, %v2729
    %v2952 = vpack.c.b16 %v2732, %v2731
    %v2953 = vpack.c.b16 %v2734, %v2733
    %v2954 = vpack.c.b16 %v2736, %v2735
    %v2955 = vpack.c.b16 %v2738, %v2737
    %v2956 = vpack.c.b16 %v2740, %v2739
    %v2957 = vpack.c.b16 %v2742, %v2741
    %v2958 = vpack.c.b16 %v2744, %v2743
    %v2959 = vpack.c.b16 %v2746, %v2745
    %v2960 = vpack.c.b16 %v2748, %v2747
    %v2961 = vpack.c.b16 %v2750, %v2749
    %v2962 = vpack.c.b16 %v2752, %v2751
    %v2963 = vpack.c.b16 %v2754, %v2753
    %v2964 = vpack.c.b16 %v2756, %v2755
    %v2965 = vpack.c.b16 %v2758, %v2757
    %v2966 = vpack.c.b16 %v2760, %v2759
    %v2967 = vpack.c.b16 %v2762, %v2761
    %v2968 = vpack.c.b16 %v2764, %v2763
    %v2969 = vpack.c.b16 %v2766, %v2765
    %v2970 = vpack.c.b16 %v2768, %v2767
    %v2971 = vpack.c.b16 %v2770, %v2769
    %v2972 = vpack.c.b16 %v2772, %v2771
    %v2973 = vpack.c.b16 %v2774, %v2773
    %v2974 = vpack.c.b16 %v2776, %v2775
    %v2975 = vpack.c.b16 %v2778, %v2777
    %v2976 = vpack.c.b16 %v2780, %v2779
    %v2977 = vpack.c.b16 %v2782, %v2781
    %v2978 = vpack.c.b16 %v2784, %v2783
    %v2979 = vpack.c.b16 %v2786, %v2785
    %v2980 = vpack.c.b16 %v2788, %v2787
    %v2981 = vpack.c.b16 %v2790, %v2789
    %v2982 = vpack.c.b16 %v2792, %v2791
    %v2983 = vpack.c.b16 %v2794, %v2793
    %v2984 = vpack.c.b16 %v2796, %v2795
    %v2985 = vpack.c.b16 %v2798, %v2797
    %v2986 = vpack.c.b16 %v2800, %v2799
    %v2987 = vpack.c.b16 %v2802, %v2801
    %v2988 = vpack.c.b16 %v2804, %v2803
    %v2989 = vpack.c.b16 %v2806, %v2805
    %v2990 = vpack.c.b16 %v2808, %v2807
    %v2991 = vpack.c.b16 %v2810, %v2809
    %v2992 = vpack.c.b16 %v2812, %v2811
    %v2993 = vpack.c.b16 %v2814, %v2813
    %v2994 = vpack.c.b16 %v2816, %v2815
    %v2995 = vpack.c.b16 %v2818, %v2817
    %v2996 = vpack.c.b16 %v2820, %v2819
    %v2997 = vpack.c.b16 %v2822, %v2821
    %v2998 = vpack.c.b16 %v2824, %v2823
    %v2999 = vpack.c.b16 %v2826, %v2825
    %v3000 = vpack.c.b16 %v2828, %v2827
    %v3001 = vpack.c.b16 %v2830, %v2829
    %v3002 = vpack.c.b16 %v2832, %v2831
    %v3003 = vpack.c.b16 %v2834, %v2833
    %v3004 = vpack.c.b16 %v2836, %v2835
    %v3005 = vpack.c.b16 %v2838, %v2837
    %v3006 = vpack.c.b16 %v2840, %v2839
    %v3007 = vpack.c.b16 %v2842, %v2841
    %v3008 = vpack.c.b16 %v2844, %v2843
    %v3009 = vpack.c.b16 %v2846, %v2845
    %v3010 = vpack.c.b16 %v2848, %v2847
    %v3011 = vpack.c.b16 %v2850, %v2849
    %v3012 = vpack.c.b16 %v2852, %v2851
    %v3013 = vpack.c.b16 %v2854, %v2853
    %v3014 = vpack.c.b16 %v2856, %v2855
    %v3015 = vpack.c.b16 %v2858, %v2857
    %v3016 = vpack.c.b16 %v2860, %v2859
    %v3017 = vpack.c.b16 %v2862, %v2861
    %v3018 = vpack.c.b16 %v2864, %v2863
    %v3019 = vpack.c.b16 %v2866, %v2865
    %v3020 = vpack.c.b16 %v2868, %v2867
    %v3021 = vpack.c.b16 %v2870, %v2869
    %v3022 = vpack.c.b16 %v2872, %v2871
    %v3023 = vpack.c.b16 %v2874, %v2873
    %v3024 = vpack.c.b16 %v2876, %v2875
    %v3025 = vpack.c.b16 %v2878, %v2877
    %v3026 = vpack.c.b16 %v2880, %v2879
    %v3027 = vpack.c.b16 %v2882, %v2881
    %v3028 = vpack.c.b16 %v2884, %v2883
    %3173 = vmatprep.subr.bf16.mxu0 0
    %3174 = vmatpush1.bf16.msra.mxu0 %v2885
    %3175 = vmatprep.subr.bf16.mxu0 0
    %3176 = vmatpush1.bf16.msra.mxu0 %v2886
    %3177 = vmatprep.subr.bf16.mxu0 0
    %3178 = vmatpush1.bf16.msra.mxu0 %v2887
    %3179 = vmatprep.subr.bf16.mxu0 0
    %3180 = vmatpush1.bf16.msra.mxu0 %v2888
    %3181 = vmatprep.subr.bf16.mxu0 0
    %3182 = vmatpush1.bf16.msra.mxu0 %v2889
    %3183 = vmatprep.subr.bf16.mxu0 0
    %3184 = vmatpush1.bf16.msra.mxu0 %v2890
    %3185 = vmatprep.subr.bf16.mxu0 0
    %3186 = vmatpush1.bf16.msra.mxu0 %v2891
    %3187 = vmatprep.subr.bf16.mxu0 0
    %3188 = vmatpush1.bf16.msra.mxu0 %v2892
    %3189 = vmatprep.subr.bf16.mxu0 0
    %3190 = vmatpush1.bf16.msra.mxu0 %v2893
    %3191 = vmatprep.subr.bf16.mxu0 0
    %3192 = vmatpush1.bf16.msra.mxu0 %v2894
    %3193 = vmatprep.subr.bf16.mxu0 0
    %3194 = vmatpush1.bf16.msra.mxu0 %v2895
    %3195 = vmatprep.subr.bf16.mxu0 0
    %3196 = vmatpush1.bf16.msra.mxu0 %v2896
    %3197 = vmatprep.subr.bf16.mxu0 0
    %3198 = vmatpush1.bf16.msra.mxu0 %v2897
    %3199 = vmatprep.subr.bf16.mxu0 0
    %3200 = vmatpush1.bf16.msra.mxu0 %v2898
    %3201 = vmatprep.subr.bf16.mxu0 0
    %3202 = vmatpush1.bf16.msra.mxu0 %v2899
    %3203 = vmatprep.subr.bf16.mxu0 0
    %3204 = vmatpush1.bf16.msra.mxu0 %v2900
    %3205 = vmatprep.mubr.bf16.mxu0 %v78
    %3206 = vmatmul.mubr.bf16.gmra.mrb[0].mxu0 %v77
    %v3207 = vpop.f32.mrb[0].mxu0
    %v3208 = vadd.f32 0.0, %v3207
    %v3209 = vpop.f32.mrb[0].mxu0
    %v3210 = vpop.f32.mrb[0].mxu0
    %v3211 = vpop.f32.mrb[0].mxu0
    %3212 = vdwg.mxu0
    %3213 = vmatprep.subr.bf16.mxu0 0
    %3214 = vmatpush1.bf16.msra.mxu0 %v2901
    %3215 = vmatprep.subr.bf16.mxu0 0
    %3216 = vmatpush1.bf16.msra.mxu0 %v2902
    %3217 = vmatprep.subr.bf16.mxu0 0
    %3218 = vmatpush1.bf16.msra.mxu0 %v2903
    %3219 = vmatprep.subr.bf16.mxu0 0
    %3220 = vmatpush1.bf16.msra.mxu0 %v2904
    %3221 = vmatprep.subr.bf16.mxu0 0
    %3222 = vmatpush1.bf16.msra.mxu0 %v2905
    %3223 = vmatprep.subr.bf16.mxu0 0
    %3224 = vmatpush1.bf16.msra.mxu0 %v2906
    %3225 = vmatprep.subr.bf16.mxu0 0
    %3226 = vmatpush1.bf16.msra.mxu0 %v2907
    %3227 = vmatprep.subr.bf16.mxu0 0
    %3228 = vmatpush1.bf16.msra.mxu0 %v2908
    %3229 = vmatprep.subr.bf16.mxu0 0
    %3230 = vmatpush1.bf16.msra.mxu0 %v2909
    %3231 = vmatprep.subr.bf16.mxu0 0
    %3232 = vmatpush1.bf16.msra.mxu0 %v2910
    %3233 = vmatprep.subr.bf16.mxu0 0
    %3234 = vmatpush1.bf16.msra.mxu0 %v2911
    %3235 = vmatprep.subr.bf16.mxu0 0
    %3236 = vmatpush1.bf16.msra.mxu0 %v2912
    %3237 = vmatprep.subr.bf16.mxu0 0
    %3238 = vmatpush1.bf16.msra.mxu0 %v2913
    %3239 = vmatprep.subr.bf16.mxu0 0
    %3240 = vmatpush1.bf16.msra.mxu0 %v2914
    %3241 = vmatprep.subr.bf16.mxu0 0
    %3242 = vmatpush1.bf16.msra.mxu0 %v2915
    %3243 = vmatprep.subr.bf16.mxu0 0
    %3244 = vmatpush1.bf16.msra.mxu0 %v2916
    %3245 = vmatprep.mubr.bf16.mxu0 %v80
    %3246 = vmatmul.mubr.bf16.gmra.mrb[0].mxu0 %v79
    %v3247 = vpop.f32.mrb[0].mxu0
    %v3248 = vadd.f32 %v3208, %v3247
    %v3249 = vpop.f32.mrb[0].mxu0
    %v3250 = vpop.f32.mrb[0].mxu0
    %v3251 = vpop.f32.mrb[0].mxu0
    %3252 = vdwg.mxu0
    %3253 = vmatprep.subr.bf16.mxu0 0
    %3254 = vmatpush1.bf16.msra.mxu0 %v2917
    %3255 = vmatprep.subr.bf16.mxu0 0
    %3256 = vmatpush1.bf16.msra.mxu0 %v2918
    %3257 = vmatprep.subr.bf16.mxu0 0
    %3258 = vmatpush1.bf16.msra.mxu0 %v2919
    %3259 = vmatprep.subr.bf16.mxu0 0
    %3260 = vmatpush1.bf16.msra.mxu0 %v2920
    %3261 = vmatprep.subr.bf16.mxu0 0
    %3262 = vmatpush1.bf16.msra.mxu0 %v2921
    %3263 = vmatprep.subr.bf16.mxu0 0
    %3264 = vmatpush1.bf16.msra.mxu0 %v2922
    %3265 = vmatprep.subr.bf16.mxu0 0
    %3266 = vmatpush1.bf16.msra.mxu0 %v2923
    %3267 = vmatprep.subr.bf16.mxu0 0
    %3268 = vmatpush1.bf16.msra.mxu0 %v2924
    %3269 = vmatprep.subr.bf16.mxu0 0
    %3270 = vmatpush1.bf16.msra.mxu0 %v2925
    %3271 = vmatprep.subr.bf16.mxu0 0
    %3272 = vmatpush1.bf16.msra.mxu0 %v2926
    %3273 = vmatprep.subr.bf16.mxu0 0
    %3274 = vmatpush1.bf16.msra.mxu0 %v2927
    %3275 = vmatprep.subr.bf16.mxu0 0
    %3276 = vmatpush1.bf16.msra.mxu0 %v2928
    %3277 = vmatprep.subr.bf16.mxu0 0
    %3278 = vmatpush1.bf16.msra.mxu0 %v2929
    %3279 = vmatprep.subr.bf16.mxu0 0
    %3280 = vmatpush1.bf16.msra.mxu0 %v2930
    %3281 = vmatprep.subr.bf16.mxu0 0
    %3282 = vmatpush1.bf16.msra.mxu0 %v2931
    %3283 = vmatprep.subr.bf16.mxu0 0
    %3284 = vmatpush1.bf16.msra.mxu0 %v2932
    %3285 = vmatprep.mubr.bf16.mxu0 %v82
    %3286 = vmatmul.mubr.bf16.gmra.mrb[0].mxu0 %v81
    %v3287 = vpop.f32.mrb[0].mxu0
    %v3288 = vadd.f32 %v3248, %v3287
    %v3289 = vpop.f32.mrb[0].mxu0
    %v3290 = vpop.f32.mrb[0].mxu0
    %v3291 = vpop.f32.mrb[0].mxu0
    %3292 = vdwg.mxu0
    %3293 = vmatprep.subr.bf16.mxu0 0
    %3294 = vmatpush1.bf16.msra.mxu0 %v2933
    %3295 = vmatprep.subr.bf16.mxu0 0
    %3296 = vmatpush1.bf16.msra.mxu0 %v2934
    %3297 = vmatprep.subr.bf16.mxu0 0
    %3298 = vmatpush1.bf16.msra.mxu0 %v2935
    %3299 = vmatprep.subr.bf16.mxu0 0
    %3300 = vmatpush1.bf16.msra.mxu0 %v2936
    %3301 = vmatprep.subr.bf16.mxu0 0
    %3302 = vmatpush1.bf16.msra.mxu0 %v2937
    %3303 = vmatprep.subr.bf16.mxu0 0
    %3304 = vmatpush1.bf16.msra.mxu0 %v2938
    %3305 = vmatprep.subr.bf16.mxu0 0
    %3306 = vmatpush1.bf16.msra.mxu0 %v2939
    %3307 = vmatprep.subr.bf16.mxu0 0
    %3308 = vmatpush1.bf16.msra.mxu0 %v2940
    %3309 = vmatprep.subr.bf16.mxu0 0
    %3310 = vmatpush1.bf16.msra.mxu0 %v2941
    %3311 = vmatprep.subr.bf16.mxu0 0
    %3312 = vmatpush1.bf16.msra.mxu0 %v2942
    %3313 = vmatprep.subr.bf16.mxu0 0
    %3314 = vmatpush1.bf16.msra.mxu0 %v2943
    %3315 = vmatprep.subr.bf16.mxu0 0
    %3316 = vmatpush1.bf16.msra.mxu0 %v2944
    %3317 = vmatprep.subr.bf16.mxu0 0
    %3318 = vmatpush1.bf16.msra.mxu0 %v2945
    %3319 = vmatprep.subr.bf16.mxu0 0
    %3320 = vmatpush1.bf16.msra.mxu0 %v2946
    %3321 = vmatprep.subr.bf16.mxu0 0
    %3322 = vmatpush1.bf16.msra.mxu0 %v2947
    %3323 = vmatprep.subr.bf16.mxu0 0
    %3324 = vmatpush1.bf16.msra.mxu0 %v2948
    %3325 = vmatprep.mubr.bf16.mxu0 %v84
    %3326 = vmatmul.mubr.bf16.gmra.mrb[0].mxu0 %v83
    %v3327 = vpop.f32.mrb[0].mxu0
    %v3328 = vadd.f32 %v3288, %v3327
    %v3329 = vpop.f32.mrb[0].mxu0
    %v3330 = vpop.f32.mrb[0].mxu0
    %v3331 = vpop.f32.mrb[0].mxu0
    %3332 = vdwg.mxu0
    %3333 = vmatprep.subr.bf16.mxu0 0
    %3334 = vmatpush1.bf16.msra.mxu0 %v2949
    %3335 = vmatprep.subr.bf16.mxu0 0
    %3336 = vmatpush1.bf16.msra.mxu0 %v2950
    %3337 = vmatprep.subr.bf16.mxu0 0
    %3338 = vmatpush1.bf16.msra.mxu0 %v2951
    %3339 = vmatprep.subr.bf16.mxu0 0
    %3340 = vmatpush1.bf16.msra.mxu0 %v2952
    %3341 = vmatprep.subr.bf16.mxu0 0
    %3342 = vmatpush1.bf16.msra.mxu0 %v2953
    %3343 = vmatprep.subr.bf16.mxu0 0
    %3344 = vmatpush1.bf16.msra.mxu0 %v2954
    %3345 = vmatprep.subr.bf16.mxu0 0
    %3346 = vmatpush1.bf16.msra.mxu0 %v2955
    %3347 = vmatprep.subr.bf16.mxu0 0
    %3348 = vmatpush1.bf16.msra.mxu0 %v2956
    %3349 = vmatprep.subr.bf16.mxu0 0
    %3350 = vmatpush1.bf16.msra.mxu0 %v2957
    %3351 = vmatprep.subr.bf16.mxu0 0
    %3352 = vmatpush1.bf16.msra.mxu0 %v2958
    %3353 = vmatprep.subr.bf16.mxu0 0
    %3354 = vmatpush1.bf16.msra.mxu0 %v2959
    %3355 = vmatprep.subr.bf16.mxu0 0
    %3356 = vmatpush1.bf16.msra.mxu0 %v2960
    %3357 = vmatprep.subr.bf16.mxu0 0
    %3358 = vmatpush1.bf16.msra.mxu0 %v2961
    %3359 = vmatprep.subr.bf16.mxu0 0
    %3360 = vmatpush1.bf16.msra.mxu0 %v2962
    %3361 = vmatprep.subr.bf16.mxu0 0
    %3362 = vmatpush1.bf16.msra.mxu0 %v2963
    %3363 = vmatprep.subr.bf16.mxu0 0
    %3364 = vmatpush1.bf16.msra.mxu0 %v2964
    %3365 = vmatprep.mubr.bf16.mxu0 %v86
    %3366 = vmatmul.mubr.bf16.gmra.mrb[0].mxu0 %v85
    %v3367 = vpop.f32.mrb[0].mxu0
    %v3368 = vadd.f32 %v3328, %v3367
    %v3369 = vpop.f32.mrb[0].mxu0
    %v3370 = vpop.f32.mrb[0].mxu0
    %v3371 = vpop.f32.mrb[0].mxu0
    %3372 = vdwg.mxu0
    %3373 = vmatprep.subr.bf16.mxu0 0
    %3374 = vmatpush1.bf16.msra.mxu0 %v2965
    %3375 = vmatprep.subr.bf16.mxu0 0
    %3376 = vmatpush1.bf16.msra.mxu0 %v2966
    %3377 = vmatprep.subr.bf16.mxu0 0
    %3378 = vmatpush1.bf16.msra.mxu0 %v2967
    %3379 = vmatprep.subr.bf16.mxu0 0
    %3380 = vmatpush1.bf16.msra.mxu0 %v2968
    %3381 = vmatprep.subr.bf16.mxu0 0
    %3382 = vmatpush1.bf16.msra.mxu0 %v2969
    %3383 = vmatprep.subr.bf16.mxu0 0
    %3384 = vmatpush1.bf16.msra.mxu0 %v2970
    %3385 = vmatprep.subr.bf16.mxu0 0
    %3386 = vmatpush1.bf16.msra.mxu0 %v2971
    %3387 = vmatprep.subr.bf16.mxu0 0
    %3388 = vmatpush1.bf16.msra.mxu0 %v2972
    %3389 = vmatprep.subr.bf16.mxu0 0
    %3390 = vmatpush1.bf16.msra.mxu0 %v2973
    %3391 = vmatprep.subr.bf16.mxu0 0
    %3392 = vmatpush1.bf16.msra.mxu0 %v2974
    %3393 = vmatprep.subr.bf16.mxu0 0
    %3394 = vmatpush1.bf16.msra.mxu0 %v2975
    %3395 = vmatprep.subr.bf16.mxu0 0
    %3396 = vmatpush1.bf16.msra.mxu0 %v2976
    %3397 = vmatprep.subr.bf16.mxu0 0
    %3398 = vmatpush1.bf16.msra.mxu0 %v2977
    %3399 = vmatprep.subr.bf16.mxu0 0
    %3400 = vmatpush1.bf16.msra.mxu0 %v2978
    %3401 = vmatprep.subr.bf16.mxu0 0
    %3402 = vmatpush1.bf16.msra.mxu0 %v2979
    %3403 = vmatprep.subr.bf16.mxu0 0
    %3404 = vmatpush1.bf16.msra.mxu0 %v2980
    %3405 = vmatprep.mubr.bf16.mxu0 %v88
    %3406 = vmatmul.mubr.bf16.gmra.mrb[0].mxu0 %v87
    %v3407 = vpop.f32.mrb[0].mxu0
    %v3408 = vadd.f32 %v3368, %v3407
    %v3409 = vpop.f32.mrb[0].mxu0
    %v3410 = vpop.f32.mrb[0].mxu0
    %v3411 = vpop.f32.mrb[0].mxu0
    %3412 = vdwg.mxu0
    %3413 = vmatprep.subr.bf16.mxu0 0
    %3414 = vmatpush1.bf16.msra.mxu0 %v2981
    %3415 = vmatprep.subr.bf16.mxu0 0
    %3416 = vmatpush1.bf16.msra.mxu0 %v2982
    %3417 = vmatprep.subr.bf16.mxu0 0
    %3418 = vmatpush1.bf16.msra.mxu0 %v2983
    %3419 = vmatprep.subr.bf16.mxu0 0
    %3420 = vmatpush1.bf16.msra.mxu0 %v2984
    %3421 = vmatprep.subr.bf16.mxu0 0
    %3422 = vmatpush1.bf16.msra.mxu0 %v2985
    %3423 = vmatprep.subr.bf16.mxu0 0
    %3424 = vmatpush1.bf16.msra.mxu0 %v2986
    %3425 = vmatprep.subr.bf16.mxu0 0
    %3426 = vmatpush1.bf16.msra.mxu0 %v2987
    %3427 = vmatprep.subr.bf16.mxu0 0
    %3428 = vmatpush1.bf16.msra.mxu0 %v2988
    %3429 = vmatprep.subr.bf16.mxu0 0
    %3430 = vmatpush1.bf16.msra.mxu0 %v2989
    %3431 = vmatprep.subr.bf16.mxu0 0
    %3432 = vmatpush1.bf16.msra.mxu0 %v2990
    %3433 = vmatprep.subr.bf16.mxu0 0
    %3434 = vmatpush1.bf16.msra.mxu0 %v2991
    %3435 = vmatprep.subr.bf16.mxu0 0
    %3436 = vmatpush1.bf16.msra.mxu0 %v2992
    %3437 = vmatprep.subr.bf16.mxu0 0
    %3438 = vmatpush1.bf16.msra.mxu0 %v2993
    %3439 = vmatprep.subr.bf16.mxu0 0
    %3440 = vmatpush1.bf16.msra.mxu0 %v2994
    %3441 = vmatprep.subr.bf16.mxu0 0
    %3442 = vmatpush1.bf16.msra.mxu0 %v2995
    %3443 = vmatprep.subr.bf16.mxu0 0
    %3444 = vmatpush1.bf16.msra.mxu0 %v2996
    %3445 = vmatprep.mubr.bf16.mxu0 %v90
    %3446 = vmatmul.mubr.bf16.gmra.mrb[0].mxu0 %v89
    %v3447 = vpop.f32.mrb[0].mxu0
    %v3448 = vadd.f32 %v3408, %v3447
    %v3449 = vpop.f32.mrb[0].mxu0
    %v3450 = vpop.f32.mrb[0].mxu0
    %v3451 = vpop.f32.mrb[0].mxu0
    %3452 = vdwg.mxu0
    %3453 = vmatprep.subr.bf16.mxu0 0
    %3454 = vmatpush1.bf16.msra.mxu0 %v2997
    %3455 = vmatprep.subr.bf16.mxu0 0
    %3456 = vmatpush1.bf16.msra.mxu0 %v2998
    %3457 = vmatprep.subr.bf16.mxu0 0
    %3458 = vmatpush1.bf16.msra.mxu0 %v2999
    %3459 = vmatprep.subr.bf16.mxu0 0
    %3460 = vmatpush1.bf16.msra.mxu0 %v3000
    %3461 = vmatprep.subr.bf16.mxu0 0
    %3462 = vmatpush1.bf16.msra.mxu0 %v3001
    %3463 = vmatprep.subr.bf16.mxu0 0
    %3464 = vmatpush1.bf16.msra.mxu0 %v3002
    %3465 = vmatprep.subr.bf16.mxu0 0
    %3466 = vmatpush1.bf16.msra.mxu0 %v3003
    %3467 = vmatprep.subr.bf16.mxu0 0
    %3468 = vmatpush1.bf16.msra.mxu0 %v3004
    %3469 = vmatprep.subr.bf16.mxu0 0
    %3470 = vmatpush1.bf16.msra.mxu0 %v3005
    %3471 = vmatprep.subr.bf16.mxu0 0
    %3472 = vmatpush1.bf16.msra.mxu0 %v3006
    %3473 = vmatprep.subr.bf16.mxu0 0
    %3474 = vmatpush1.bf16.msra.mxu0 %v3007
    %3475 = vmatprep.subr.bf16.mxu0 0
    %3476 = vmatpush1.bf16.msra.mxu0 %v3008
    %3477 = vmatprep.subr.bf16.mxu0 0
    %3478 = vmatpush1.bf16.msra.mxu0 %v3009
    %3479 = vmatprep.subr.bf16.mxu0 0
    %3480 = vmatpush1.bf16.msra.mxu0 %v3010
    %3481 = vmatprep.subr.bf16.mxu0 0
    %3482 = vmatpush1.bf16.msra.mxu0 %v3011
    %3483 = vmatprep.subr.bf16.mxu0 0
    %3484 = vmatpush1.bf16.msra.mxu0 %v3012
    %3485 = vmatprep.mubr.bf16.mxu0 %v92
    %3486 = vmatmul.mubr.bf16.gmra.mrb[0].mxu0 %v91
    %v3487 = vpop.f32.mrb[0].mxu0
    %v3488 = vadd.f32 %v3448, %v3487
    %v3489 = vpop.f32.mrb[0].mxu0
    %v3490 = vpop.f32.mrb[0].mxu0
    %v3491 = vpop.f32.mrb[0].mxu0
    %3492 = vdwg.mxu0
    %3493 = vmatprep.subr.bf16.mxu0 0
    %3494 = vmatpush1.bf16.msra.mxu0 %v3013
    %3495 = vmatprep.subr.bf16.mxu0 0
    %3496 = vmatpush1.bf16.msra.mxu0 %v3014
    %3497 = vmatprep.subr.bf16.mxu0 0
    %3498 = vmatpush1.bf16.msra.mxu0 %v3015
    %3499 = vmatprep.subr.bf16.mxu0 0
    %3500 = vmatpush1.bf16.msra.mxu0 %v3016
    %3501 = vmatprep.subr.bf16.mxu0 0
    %3502 = vmatpush1.bf16.msra.mxu0 %v3017
    %3503 = vmatprep.subr.bf16.mxu0 0
    %3504 = vmatpush1.bf16.msra.mxu0 %v3018
    %3505 = vmatprep.subr.bf16.mxu0 0
    %3506 = vmatpush1.bf16.msra.mxu0 %v3019
    %3507 = vmatprep.subr.bf16.mxu0 0
    %3508 = vmatpush1.bf16.msra.mxu0 %v3020
    %3509 = vmatprep.subr.bf16.mxu0 0
    %3510 = vmatpush1.bf16.msra.mxu0 %v3021
    %3511 = vmatprep.subr.bf16.mxu0 0
    %3512 = vmatpush1.bf16.msra.mxu0 %v3022
    %3513 = vmatprep.subr.bf16.mxu0 0
    %3514 = vmatpush1.bf16.msra.mxu0 %v3023
    %3515 = vmatprep.subr.bf16.mxu0 0
    %3516 = vmatpush1.bf16.msra.mxu0 %v3024
    %3517 = vmatprep.subr.bf16.mxu0 0
    %3518 = vmatpush1.bf16.msra.mxu0 %v3025
    %3519 = vmatprep.subr.bf16.mxu0 0
    %3520 = vmatpush1.bf16.msra.mxu0 %v3026
    %3521 = vmatprep.subr.bf16.mxu0 0
    %3522 = vmatpush1.bf16.msra.mxu0 %v3027
    %3523 = vmatprep.subr.bf16.mxu0 0
    %3524 = vmatpush1.bf16.msra.mxu0 %v3028
    %3525 = vmatprep.mubr.bf16.mxu0 %v94
    %3526 = vmatmul.mubr.bf16.gmra.mrb[0].mxu0 %v93
    %v3527 = vpop.f32.mrb[0].mxu0
    %v3528 = vadd.f32 %v3488, %v3527
    %v3529 = vpop.f32.mrb[0].mxu0
    %v3530 = vpop.f32.mrb[0].mxu0
    %v3531 = vpop.f32.mrb[0].mxu0
    %3532 = vdwg.mxu0
    %v3533 = vadd.f32 %v2304, %v3528
    %s3534 = sld [smem:[#allocation2]]
    %v3535 = vstv %s3534
    %v3536 = vadd.f32 %v3533, %v3535
    %v3537 = vsub.f32 0.0, %v3536
    %v3538 = vmul.f32 %v3537, 1.442695
    %v3539 = vpow.pop %v3538
    %v3540 = vadd.f32 %v3539, 1.0
    %v3541 = vrcp.pop %v3540
    %v3542 = vmul.f32 1.0, %v3541
    %3543 = vst [vmem:[#allocation9] sm:$0xff] %v3542
    // Predicated region
    $region30: #{tpu_custom_call.1} parent=1 // pred_check
      _
    $region31: #{tpu_custom_call.1} parent=1 // pred_check_branch
      %3545 = sbr.rel (0) target = $region33
    $region32: #{tpu_custom_call.1} parent=1 // pred_region
      %s3547 = ssub.s32 128, 128
      %3548 = vsyncadd [#allocation5], %s3547
      %s3550 = sshll.u32 [#allocation9], 4
      %s3551 = int_to_ptr.vmem [resolvable:$true] %s3550
      %3553 = dma.vmem_to_hbm [thread:$0]  %s3551, 128, %s4, [#allocation5]
    $region33: #{tpu_custom_call.1} parent=1 // pred_fallthru
      _
    // Predicated region
    $region34: #{tpu_custom_call.1} parent=1 // pred_check
      _
    $region35: #{tpu_custom_call.1} parent=1 // pred_check_branch
      %3555 = sbr.rel (0) target = $region37
    $region36: #{tpu_custom_call.1} parent=1 // pred_region
      %3556 = dma.done [#allocation5], 128
    $region37: #{tpu_custom_call.1} parent=1 // pred_fallthru
      _
    %3557 = vsyncpa [#allocation4], 1
    %3558 = vsyncpa [#allocation7], 1
    %3559 = vsyncpa [#allocation5], 1

</llo_original>
